<compile_context>
chip_gen: v5e
topology: v5e:2x2
jax: 0.10.0
libtpu: 0.0.40
codegen_flags: <defaults>
</compile_context>

<pallas_src>
import functools

import jax
import jax.numpy as jnp
import numpy as np
from jax.experimental import pallas as pl
from jax.experimental.pallas import tpu as pltpu

LANE = 128      # lane-dense feature padding
ROW_PAD = 128   # node-count padding (MXU-friendly, lane/sublane aligned)


def _round_up(x, m):
    return (x + m - 1) // m * m


def _vmem_limit_bytes():
    """Derive a scoped-VMEM budget from the chip (v7x has only 64 MiB/TC)."""
    try:
        return int(pltpu.get_tpu_info().vmem_capacity_bytes * 0.7)
    except Exception:   # query unavailable -> fall back to compiler defaults
        return None


# ----------------------------------------------------------------------------
# Single fused kernel: all GCN layers, with A and all weights resident in VMEM.
#   refs = (a, h0, w0, b0, w1, b1, ..., w_{L-1}, b_{L-1}, out)
# ----------------------------------------------------------------------------
def _fused_gcn_kernel(*refs, num_gcn_layers, apply_relu):
    a_ref, h_ref = refs[0], refs[1]
    out_ref = refs[-1]

    a = a_ref[...]
    h = h_ref[...]
    for l in range(num_gcn_layers):              # unrolled at trace time
        w = refs[2 + 2 * l][...]
        b = refs[3 + 2 * l][...]
        hw = jnp.dot(h, w, preferred_element_type=jnp.float32)        # H @ W
        h = jnp.dot(a, hw, preferred_element_type=jnp.float32) + b    # A @ HW + b
        if apply_relu:
            h = jnp.maximum(h, 0.0)
    out_ref[...] = h.astype(out_ref.dtype)


def fused_gcn_forward(a, h0, weights, biases, *, apply_relu, out_dtype):
    """a: [Np,Np] f32, h0: [Np,Fp] f32, weights/biases: lane-padded per layer."""
    num_gcn_layers = len(weights)
    n_pad = a.shape[0]
    c_pad = weights[-1].shape[1]

    inputs = [a, h0]
    for w, b in zip(weights, biases):
        inputs += [w, b]

    # Full-array blocks: everything (<1 MiB here) lives in VMEM for the whole
    # call; grid=(1,) => single invocation, no reduction scratch needed.
    in_specs = [pl.BlockSpec(arr.shape, lambda i: (0, 0)) for arr in inputs]
    out_specs = pl.BlockSpec((n_pad, c_pad), lambda i: (0, 0))

    cp_kwargs = dict(dimension_semantics=("arbitrary",))
    vmem_limit = _vmem_limit_bytes()
    if vmem_limit is not None:
        cp_kwargs["vmem_limit_bytes"] = vmem_limit

    kernel = functools.partial(
        _fused_gcn_kernel,
        num_gcn_layers=num_gcn_layers,
        apply_relu=apply_relu,
    )
    return pl.pallas_call(
        kernel,
        out_shape=jax.ShapeDtypeStruct((n_pad, c_pad), out_dtype),
        grid=(1,),
        in_specs=in_specs,
        out_specs=out_specs,
        compiler_params=pltpu.CompilerParams(**cp_kwargs),
    )(*inputs)


# ----------------------------------------------------------------------------
# CSR -> dense zero-padded f32 adjacency (data-dependent scatter, plain JAX).
# ----------------------------------------------------------------------------
def csr_to_dense(row_ptr, col_idx, edge_val, *, nnz, num_nodes, n_pad):
    counts = row_ptr[1:] - row_ptr[:-1]
    rows = jnp.repeat(
        jnp.arange(num_nodes, dtype=jnp.int32), counts, total_repeat_length=nnz
    )
    a = jnp.zeros((n_pad, n_pad), dtype=jnp.float32)
    return a.at[rows, col_idx].set(edge_val.astype(jnp.float32))


# ----------------------------------------------------------------------------
# Net: num_layers hidden GCN layers + final classifier GCN layer.
# ----------------------------------------------------------------------------
class Net:
    def __init__(self, num_layers, in_dim, num_hidden, num_classes,
                 activation=None, key=None):
        if activation not in (None, "relu"):
            raise ValueError(f"unsupported activation: {activation!r}")
        if key is None:
            key = jax.random.PRNGKey(0)
        self.num_layers = num_layers
        self.in_dim = in_dim
        self.num_hidden = num_hidden
        self.num_classes = num_classes
        self.activation = activation

        dims = [(in_dim, num_hidden)]
        for _ in range(1, num_layers):
            dims.append((num_hidden, num_hidden))
        dims.append((num_hidden, num_classes))

        self.weights, self.biases = [], []
        for (din, dout) in dims:
            key, wk = jax.random.split(key)
            scale = 1.0 / np.sqrt(din)
            w = jax.random.uniform(wk, (din, dout), jnp.float32,
                                   minval=-scale, maxval=scale)
            b = jnp.zeros((1, dout), jnp.float32)
            self.weights.append(w)
            self.biases.append(b)

        # Lane-dense (zero-padded to multiples of 128) f32 weights / biases.
        self.weights_p, self.biases_p = [], []
        for w, b in zip(self.weights, self.biases):
            din, dout = w.shape
            wp = jnp.zeros((_round_up(din, LANE), _round_up(dout, LANE)),
                           jnp.float32).at[:din, :dout].set(w)
            bp = jnp.zeros((1, _round_up(dout, LANE)),
                           jnp.float32).at[:, :dout].set(b)
            self.weights_p.append(wp)
            self.biases_p.append(bp)

        self._jit_cache = {}

    def _jitted_forward(self, nnz, num_nodes):
        cache_key = (int(nnz), int(num_nodes))
        fn = self._jit_cache.get(cache_key)
        if fn is not None:
            return fn

        n_pad = _round_up(num_nodes, ROW_PAD)
        fin_pad = self.weights_p[0].shape[0]
        in_dim = self.in_dim
        num_classes = self.num_classes
        apply_relu = self.activation == "relu"

        def fwd(row_ptr, col_idx, edge_val, x, weights_p, biases_p):
            # TODO(synk): the graph is static in a training loop; the dense A
            # should be built once per graph (or kept sparse) rather than
            # inside every forward.
            a = csr_to_dense(row_ptr, col_idx, edge_val,
                             nnz=nnz, num_nodes=num_nodes, n_pad=n_pad)
            h0 = jnp.zeros((n_pad, fin_pad), jnp.float32)
            h0 = h0.at[:num_nodes, :in_dim].set(x.astype(jnp.float32))
            out = fused_gcn_forward(a, h0, weights_p, biases_p,
                                    apply_relu=apply_relu,
                                    out_dtype=jnp.float32)
            return out[:num_nodes, :num_classes]

        fn = jax.jit(fwd)
        self._jit_cache[cache_key] = fn
        return fn

    def forward(self, nnz, row_ptr_s, col_idx_s, edge_val_csr_s, p_csr, q_csr,
                col_ptr_s, row_idx_s, edge_val_csc_s, p_csc, q_csc, x):
        # CSC arrays and p/q partition metadata are only used by the multi-GPU
        # backward / SpMM-transpose path; unused in this single-device forward.
        del p_csr, q_csr, col_ptr_s, row_idx_s, edge_val_csc_s, p_csc, q_csc
        fwd = self._jitted_forward(int(nnz), int(x.shape[0]))
        return fwd(row_ptr_s, col_idx_s, edge_val_csr_s, x,
                   self.weights_p, self.biases_p)

    __call__ = forward


# ----------------------------------------------------------------------------
# Float64 NumPy reference (true f32->f64 math, not a bf16-mirrored reference).
# ----------------------------------------------------------------------------
def reference_forward_np(net, a_dense, x):
    a = np.asarray(a_dense, np.float64)
    h = np.asarray(x, np.float64)
    apply_relu = net.activation == "relu"
    for w, b in zip(net.weights, net.biases):
        h = a @ (h @ np.asarray(w, np.float64)) + np.asarray(b, np.float64)
        if apply_relu:
            h = np.maximum(h, 0.0)
    return h


if __name__ == "__main__":
    key = jax.random.PRNGKey(0)
    # N=200 is deliberately not a multiple of 128 to exercise the padding.
    N, IN_DIM, HIDDEN, CLASSES, NUM_LAYERS = 200, 16, 32, 8, 2

    # --- deterministic synthetic graph --------------------------------------
    k_adj, k_x, k_params = jax.random.split(key, 3)
    adj = np.asarray(jax.random.bernoulli(k_adj, 0.10, (N, N)), dtype=np.float32)
    adj = np.maximum(adj, adj.T)            # symmetrize
    np.fill_diagonal(adj, 1.0)              # self-loops
    deg = adj.sum(axis=1)
    dinv = 1.0 / np.sqrt(deg)
    a_norm = ((dinv[:, None] * adj) * dinv[None, :]).astype(np.float32)

    # CSR arrays
    rows, cols = np.nonzero(a_norm)
    vals = a_norm[rows, cols].astype(np.float32)
    nnz = int(vals.shape[0])
    row_ptr = np.zeros(N + 1, dtype=np.int64)
    np.add.at(row_ptr, rows + 1, 1)
    row_ptr = np.cumsum(row_ptr).astype(np.int32)
    col_idx = cols.astype(np.int32)

    # CSC arrays (symmetric graph => identical structure); multi-GPU only.
    colsT, rowsT = np.nonzero(a_norm.T)
    valsT = a_norm.T[colsT, rowsT].astype(np.float32)
    col_ptr = np.zeros(N + 1, dtype=np.int64)
    np.add.at(col_ptr, colsT + 1, 1)
    col_ptr = np.cumsum(col_ptr).astype(np.int32)
    row_idx = rowsT.astype(np.int32)

    # Partition metadata placeholders (multi-GPU only).
    p_csr = q_csr = p_csc = q_csc = jnp.zeros((1,), jnp.int32)

    x = jax.random.normal(k_x, (N, IN_DIM), jnp.float32)

    net = Net(NUM_LAYERS, IN_DIM, HIDDEN, CLASSES, activation="relu",
              key=k_params)

    logits = net.forward(
        nnz,
        jnp.asarray(row_ptr), jnp.asarray(col_idx), jnp.asarray(vals),
        p_csr, q_csr,
        jnp.asarray(col_ptr), jnp.asarray(row_idx), jnp.asarray(valsT),
        p_csc, q_csc,
        x,
    )
    logits = jax.block_until_ready(logits)
    assert logits.shape == (N, CLASSES)

    ref = reference_forward_np(net, a_norm, np.asarray(x))
    np.testing.assert_allclose(np.asarray(logits), ref, rtol=2e-2, atol=5e-3)
    print("KERNEL_OK")
</pallas_src>

<mosaic_0001>
module attributes {stable_mosaic.version = 11 : i64} {
  func.func @_fused_gcn_kernel(%arg0: i32, %arg1: memref<256x256xf32, #tpu.memory_space<vmem>>, %arg2: memref<256x128xf32, #tpu.memory_space<vmem>>, %arg3: memref<128x128xf32, #tpu.memory_space<vmem>>, %arg4: memref<1x128xf32, #tpu.memory_space<vmem>>, %arg5: memref<128x128xf32, #tpu.memory_space<vmem>>, %arg6: memref<1x128xf32, #tpu.memory_space<vmem>>, %arg7: memref<128x128xf32, #tpu.memory_space<vmem>>, %arg8: memref<1x128xf32, #tpu.memory_space<vmem>>, %arg9: memref<256x128xf32, #tpu.memory_space<vmem>>) attributes {dimension_semantics = [#tpu.dimension_semantics<arbitrary>], iteration_bounds = array<i64: 1>, scalar_prefetch = 0 : i64, scratch_operands = 0 : i64, tpu.core_type = #tpu.core_type<tc>, window_params = [{pipeline_mode = #tpu.pipeline_mode<synchronous>, transform_indices = @transform_0, window_bounds = array<i64: 256, 256>}, {pipeline_mode = #tpu.pipeline_mode<synchronous>, transform_indices = @transform_1, window_bounds = array<i64: 256, 128>}, {pipeline_mode = #tpu.pipeline_mode<synchronous>, transform_indices = @transform_2, window_bounds = array<i64: 128, 128>}, {pipeline_mode = #tpu.pipeline_mode<synchronous>, transform_indices = @transform_3, window_bounds = array<i64: 1, 128>}, {pipeline_mode = #tpu.pipeline_mode<synchronous>, transform_indices = @transform_4, window_bounds = array<i64: 128, 128>}, {pipeline_mode = #tpu.pipeline_mode<synchronous>, transform_indices = @transform_5, window_bounds = array<i64: 1, 128>}, {pipeline_mode = #tpu.pipeline_mode<synchronous>, transform_indices = @transform_6, window_bounds = array<i64: 128, 128>}, {pipeline_mode = #tpu.pipeline_mode<synchronous>, transform_indices = @transform_7, window_bounds = array<i64: 1, 128>}, {pipeline_mode = #tpu.pipeline_mode<synchronous>, transform_indices = @transform_8, window_bounds = array<i64: 256, 128>}]} {
    %c0 = arith.constant 0 : index
    %c0_0 = arith.constant 0 : index
    %0 = vector.load %arg1[%c0, %c0_0] : memref<256x256xf32, #tpu.memory_space<vmem>>, vector<256x256xf32>
    %c0_1 = arith.constant 0 : index
    %c0_2 = arith.constant 0 : index
    %1 = vector.load %arg2[%c0_1, %c0_2] : memref<256x128xf32, #tpu.memory_space<vmem>>, vector<256x128xf32>
    %c0_3 = arith.constant 0 : index
    %c0_4 = arith.constant 0 : index
    %2 = vector.load %arg3[%c0_3, %c0_4] : memref<128x128xf32, #tpu.memory_space<vmem>>, vector<128x128xf32>
    %c0_5 = arith.constant 0 : index
    %c0_6 = arith.constant 0 : index
    %3 = vector.load %arg4[%c0_5, %c0_6] : memref<1x128xf32, #tpu.memory_space<vmem>>, vector<1x128xf32>
    %cst = arith.constant dense<0.000000e+00> : vector<256x128xf32>
    %4 = tpu.matmul %1, %2, %cst {dimension_numbers = #tpu.dot_dimension_numbers<[1], [0], [0], [1], [0, 0, 1, 1], [], []>} : vector<256x128xf32>, vector<128x128xf32>, vector<256x128xf32> -> vector<256x128xf32>
    %cst_7 = arith.constant dense<0.000000e+00> : vector<256x128xf32>
    %5 = tpu.matmul %0, %4, %cst_7 {dimension_numbers = #tpu.dot_dimension_numbers<[1], [0], [0], [1], [0, 0, 1, 1], [], []>} : vector<256x256xf32>, vector<256x128xf32>, vector<256x128xf32> -> vector<256x128xf32>
    %6 = vector.broadcast %3 : vector<1x128xf32> to vector<256x128xf32>
    %7 = arith.addf %5, %6 : vector<256x128xf32>
    %cst_8 = arith.constant 0.000000e+00 : f32
    %8 = vector.broadcast %cst_8 : f32 to vector<256x128xf32>
    %9 = arith.maximumf %7, %8 : vector<256x128xf32>
    %c0_9 = arith.constant 0 : index
    %c0_10 = arith.constant 0 : index
    %10 = vector.load %arg5[%c0_9, %c0_10] : memref<128x128xf32, #tpu.memory_space<vmem>>, vector<128x128xf32>
    %c0_11 = arith.constant 0 : index
    %c0_12 = arith.constant 0 : index
    %11 = vector.load %arg6[%c0_11, %c0_12] : memref<1x128xf32, #tpu.memory_space<vmem>>, vector<1x128xf32>
    %cst_13 = arith.constant dense<0.000000e+00> : vector<256x128xf32>
    %12 = tpu.matmul %9, %10, %cst_13 {dimension_numbers = #tpu.dot_dimension_numbers<[1], [0], [0], [1], [0, 0, 1, 1], [], []>} : vector<256x128xf32>, vector<128x128xf32>, vector<256x128xf32> -> vector<256x128xf32>
    %cst_14 = arith.constant dense<0.000000e+00> : vector<256x128xf32>
    %13 = tpu.matmul %0, %12, %cst_14 {dimension_numbers = #tpu.dot_dimension_numbers<[1], [0], [0], [1], [0, 0, 1, 1], [], []>} : vector<256x256xf32>, vector<256x128xf32>, vector<256x128xf32> -> vector<256x128xf32>
    %14 = vector.broadcast %11 : vector<1x128xf32> to vector<256x128xf32>
    %15 = arith.addf %13, %14 : vector<256x128xf32>
    %cst_15 = arith.constant 0.000000e+00 : f32
    %16 = vector.broadcast %cst_15 : f32 to vector<256x128xf32>
    %17 = arith.maximumf %15, %16 : vector<256x128xf32>
    %c0_16 = arith.constant 0 : index
    %c0_17 = arith.constant 0 : index
    %18 = vector.load %arg7[%c0_16, %c0_17] : memref<128x128xf32, #tpu.memory_space<vmem>>, vector<128x128xf32>
    %c0_18 = arith.constant 0 : index
    %c0_19 = arith.constant 0 : index
    %19 = vector.load %arg8[%c0_18, %c0_19] : memref<1x128xf32, #tpu.memory_space<vmem>>, vector<1x128xf32>
    %cst_20 = arith.constant dense<0.000000e+00> : vector<256x128xf32>
    %20 = tpu.matmul %17, %18, %cst_20 {dimension_numbers = #tpu.dot_dimension_numbers<[1], [0], [0], [1], [0, 0, 1, 1], [], []>} : vector<256x128xf32>, vector<128x128xf32>, vector<256x128xf32> -> vector<256x128xf32>
    %cst_21 = arith.constant dense<0.000000e+00> : vector<256x128xf32>
    %21 = tpu.matmul %0, %20, %cst_21 {dimension_numbers = #tpu.dot_dimension_numbers<[1], [0], [0], [1], [0, 0, 1, 1], [], []>} : vector<256x256xf32>, vector<256x128xf32>, vector<256x128xf32> -> vector<256x128xf32>
    %22 = vector.broadcast %19 : vector<1x128xf32> to vector<256x128xf32>
    %23 = arith.addf %21, %22 : vector<256x128xf32>
    %cst_22 = arith.constant 0.000000e+00 : f32
    %24 = vector.broadcast %cst_22 : f32 to vector<256x128xf32>
    %25 = arith.maximumf %23, %24 : vector<256x128xf32>
    %c0_23 = arith.constant 0 : index
    %c0_24 = arith.constant 0 : index
    %26 = vector.load %arg9[%c0_23, %c0_24] : memref<256x128xf32, #tpu.memory_space<vmem>>, vector<256x128xf32>
    tpu.vector_store %arg9[%c0_23, %c0_24], %25 {strides = array<i32>} : memref<256x128xf32, #tpu.memory_space<vmem>>, vector<256x128xf32>,
    return
  }
  func.func @transform_0(%arg0: i32) -> (i32, i32) {
    %c0_i32 = arith.constant 0 : i32
    %c0_i32_0 = arith.constant 0 : i32
    %c0_i32_1 = arith.constant 0 : i32
    return %c0_i32, %c0_i32_0 : i32, i32
  }
  func.func @transform_1(%arg0: i32) -> (i32, i32) {
    %c0_i32 = arith.constant 0 : i32
    %c0_i32_0 = arith.constant 0 : i32
    %c0_i32_1 = arith.constant 0 : i32
    return %c0_i32, %c0_i32_0 : i32, i32
  }
  func.func @transform_2(%arg0: i32) -> (i32, i32) {
    %c0_i32 = arith.constant 0 : i32
    %c0_i32_0 = arith.constant 0 : i32
    %c0_i32_1 = arith.constant 0 : i32
    return %c0_i32, %c0_i32_0 : i32, i32
  }
  func.func @transform_3(%arg0: i32) -> (i32, i32) {
    %c0_i32 = arith.constant 0 : i32
    %c0_i32_0 = arith.constant 0 : i32
    %c0_i32_1 = arith.constant 0 : i32
    return %c0_i32, %c0_i32_0 : i32, i32
  }
  func.func @transform_4(%arg0: i32) -> (i32, i32) {
    %c0_i32 = arith.constant 0 : i32
    %c0_i32_0 = arith.constant 0 : i32
    %c0_i32_1 = arith.constant 0 : i32
    return %c0_i32, %c0_i32_0 : i32, i32
  }
  func.func @transform_5(%arg0: i32) -> (i32, i32) {
    %c0_i32 = arith.constant 0 : i32
    %c0_i32_0 = arith.constant 0 : i32
    %c0_i32_1 = arith.constant 0 : i32
    return %c0_i32, %c0_i32_0 : i32, i32
  }
  func.func @transform_6(%arg0: i32) -> (i32, i32) {
    %c0_i32 = arith.constant 0 : i32
    %c0_i32_0 = arith.constant 0 : i32
    %c0_i32_1 = arith.constant 0 : i32
    return %c0_i32, %c0_i32_0 : i32, i32
  }
  func.func @transform_7(%arg0: i32) -> (i32, i32) {
    %c0_i32 = arith.constant 0 : i32
    %c0_i32_0 = arith.constant 0 : i32
    %c0_i32_1 = arith.constant 0 : i32
    return %c0_i32, %c0_i32_0 : i32, i32
  }
  func.func @transform_8(%arg0: i32) -> (i32, i32) {
    %c0_i32 = arith.constant 0 : i32
    %c0_i32_0 = arith.constant 0 : i32
    %c0_i32_1 = arith.constant 0 : i32
    return %c0_i32, %c0_i32_0 : i32, i32
  }
}

</mosaic_0001>

<llo_original>
// kernel: fwd.1
$region0: #{fwd.1}
  #allocation0 [shape = 'u32[]', space=smem, size = 0x4, offset = 0x4, fixed_abs, tag = 'smem constant byte address 0x4 - core index']
  #allocation1 [shape = 'u32[72,128]{1,0:T(1,128)}', space=vmem, size = 0x9000, scoped, tag = 'internal scratch']
  %s0 = inlined_call_operand.vmem [shape: f32[256,256], index: 0, kind: input, shape index: {}]
  %s1 = inlined_call_operand.vmem [shape: f32[256,128], index: 1, kind: input, shape index: {}]
  %s2 = inlined_call_operand.vmem [shape: f32[128,128], index: 2, kind: input, shape index: {}]
  %s3 = inlined_call_operand.vmem [shape: f32[1,128], index: 3, kind: input, shape index: {}]
  %s4 = inlined_call_operand.vmem [shape: f32[128,128], index: 4, kind: input, shape index: {}]
  %s5 = inlined_call_operand.vmem [shape: f32[1,128], index: 5, kind: input, shape index: {}]
  %s6 = inlined_call_operand.vmem [shape: f32[128,128], index: 6, kind: input, shape index: {}]
  %s7 = inlined_call_operand.vmem [shape: f32[1,128], index: 7, kind: input, shape index: {}]
  %s8 = inlined_call_operand.vmem [shape: f32[256,128], index: 8, kind: output, shape index: {}]
  %s9 = sld [smem:[#allocation0]]
  $region42: #{fwd.1} parent=0
    _
  %s11 = ssub.s32 1, %s9
  %s12 = scalar_select 0, %s11, %s9
  // Predicated region
  $region2: #{fwd.1} parent=0 // pred_check
    _
  $region3: #{fwd.1} parent=0 // pred_check_branch
    %14 = sbr.rel (0) target = $region5
  $region4: #{fwd.1} parent=0 // pred_region
    _
  $region5: #{fwd.1} parent=0 // pred_fallthru
    _
  // Predicated region
  $region6: #{fwd.1} parent=0 // pred_check
    _
  $region7: #{fwd.1} parent=0 // pred_check_branch
    %16 = sbr.rel (0) target = $region9
  $region8: #{fwd.1} parent=0 // pred_region
    _
  $region9: #{fwd.1} parent=0 // pred_fallthru
    _
  // Predicated region
  $region10: #{fwd.1} parent=0 // pred_check
    _
  $region11: #{fwd.1} parent=0 // pred_check_branch
    %18 = sbr.rel (0) target = $region13
  $region12: #{fwd.1} parent=0 // pred_region
    _
  $region13: #{fwd.1} parent=0 // pred_fallthru
    _
  // Predicated region
  $region14: #{fwd.1} parent=0 // pred_check
    _
  $region15: #{fwd.1} parent=0 // pred_check_branch
    %20 = sbr.rel (0) target = $region17
  $region16: #{fwd.1} parent=0 // pred_region
    _
  $region17: #{fwd.1} parent=0 // pred_fallthru
    _
  // Predicated region
  $region18: #{fwd.1} parent=0 // pred_check
    _
  $region19: #{fwd.1} parent=0 // pred_check_branch
    %22 = sbr.rel (0) target = $region21
  $region20: #{fwd.1} parent=0 // pred_region
    _
  $region21: #{fwd.1} parent=0 // pred_fallthru
    _
  // Predicated region
  $region22: #{fwd.1} parent=0 // pred_check
    _
  $region23: #{fwd.1} parent=0 // pred_check_branch
    %24 = sbr.rel (0) target = $region25
  $region24: #{fwd.1} parent=0 // pred_region
    _
  $region25: #{fwd.1} parent=0 // pred_fallthru
    _
  // Predicated region
  $region26: #{fwd.1} parent=0 // pred_check
    _
  $region27: #{fwd.1} parent=0 // pred_check_branch
    %26 = sbr.rel (0) target = $region29
  $region28: #{fwd.1} parent=0 // pred_region
    _
  $region29: #{fwd.1} parent=0 // pred_fallthru
    _
  // Predicated region
  $region30: #{fwd.1} parent=0 // pred_check
    _
  $region31: #{fwd.1} parent=0 // pred_check_branch
    %28 = sbr.rel (0) target = $region33
  $region32: #{fwd.1} parent=0 // pred_region
    _
  $region33: #{fwd.1} parent=0 // pred_fallthru
    _
  %v29 = vld [vmem:[%s0] sm:$0xff]
  %v30 = vld [vmem:[%s0 + $0x8] sm:$0xff]
  %v31 = vld [vmem:[%s0 + $0x10] sm:$0xff]
  %v32 = vld [vmem:[%s0 + $0x18] sm:$0xff]
  %v33 = vld [vmem:[%s0 + $0x20] sm:$0xff]
  %v34 = vld [vmem:[%s0 + $0x28] sm:$0xff]
  %v35 = vld [vmem:[%s0 + $0x30] sm:$0xff]
  %v36 = vld [vmem:[%s0 + $0x38] sm:$0xff]
  %v37 = vld [vmem:[%s0 + $0x40] sm:$0xff]
  %v38 = vld [vmem:[%s0 + $0x48] sm:$0xff]
  %v39 = vld [vmem:[%s0 + $0x50] sm:$0xff]
  %v40 = vld [vmem:[%s0 + $0x58] sm:$0xff]
  %v41 = vld [vmem:[%s0 + $0x60] sm:$0xff]
  %v42 = vld [vmem:[%s0 + $0x68] sm:$0xff]
  %v43 = vld [vmem:[%s0 + $0x70] sm:$0xff]
  %v44 = vld [vmem:[%s0 + $0x78] sm:$0xff]
  %v45 = vld [vmem:[%s0 + $0x80] sm:$0xff]
  %v46 = vld [vmem:[%s0 + $0x88] sm:$0xff]
  %v47 = vld [vmem:[%s0 + $0x90] sm:$0xff]
  %v48 = vld [vmem:[%s0 + $0x98] sm:$0xff]
  %v49 = vld [vmem:[%s0 + $0xa0] sm:$0xff]
  %v50 = vld [vmem:[%s0 + $0xa8] sm:$0xff]
  %v51 = vld [vmem:[%s0 + $0xb0] sm:$0xff]
  %v52 = vld [vmem:[%s0 + $0xb8] sm:$0xff]
  %v53 = vld [vmem:[%s0 + $0xc0] sm:$0xff]
  %v54 = vld [vmem:[%s0 + $0xc8] sm:$0xff]
  %v55 = vld [vmem:[%s0 + $0xd0] sm:$0xff]
  %v56 = vld [vmem:[%s0 + $0xd8] sm:$0xff]
  %v57 = vld [vmem:[%s0 + $0xe0] sm:$0xff]
  %v58 = vld [vmem:[%s0 + $0xe8] sm:$0xff]
  %v59 = vld [vmem:[%s0 + $0xf0] sm:$0xff]
  %v60 = vld [vmem:[%s0 + $0xf8] sm:$0xff]
  %v61 = vld [vmem:[%s0 + $0x100] sm:$0xff]
  %v62 = vld [vmem:[%s0 + $0x108] sm:$0xff]
  %v63 = vld [vmem:[%s0 + $0x110] sm:$0xff]
  %v64 = vld [vmem:[%s0 + $0x118] sm:$0xff]
  %v65 = vld [vmem:[%s0 + $0x120] sm:$0xff]
  %v66 = vld [vmem:[%s0 + $0x128] sm:$0xff]
  %v67 = vld [vmem:[%s0 + $0x130] sm:$0xff]
  %v68 = vld [vmem:[%s0 + $0x138] sm:$0xff]
  %v69 = vld [vmem:[%s0 + $0x140] sm:$0xff]
  %v70 = vld [vmem:[%s0 + $0x148] sm:$0xff]
  %v71 = vld [vmem:[%s0 + $0x150] sm:$0xff]
  %v72 = vld [vmem:[%s0 + $0x158] sm:$0xff]
  %v73 = vld [vmem:[%s0 + $0x160] sm:$0xff]
  %v74 = vld [vmem:[%s0 + $0x168] sm:$0xff]
  %v75 = vld [vmem:[%s0 + $0x170] sm:$0xff]
  %v76 = vld [vmem:[%s0 + $0x178] sm:$0xff]
  %v77 = vld [vmem:[%s0 + $0x180] sm:$0xff]
  %v78 = vld [vmem:[%s0 + $0x188] sm:$0xff]
  %v79 = vld [vmem:[%s0 + $0x190] sm:$0xff]
  %v80 = vld [vmem:[%s0 + $0x198] sm:$0xff]
  %v81 = vld [vmem:[%s0 + $0x1a0] sm:$0xff]
  %v82 = vld [vmem:[%s0 + $0x1a8] sm:$0xff]
  %v83 = vld [vmem:[%s0 + $0x1b0] sm:$0xff]
  %v84 = vld [vmem:[%s0 + $0x1b8] sm:$0xff]
  %v85 = vld [vmem:[%s0 + $0x1c0] sm:$0xff]
  %v86 = vld [vmem:[%s0 + $0x1c8] sm:$0xff]
  %v87 = vld [vmem:[%s0 + $0x1d0] sm:$0xff]
  %v88 = vld [vmem:[%s0 + $0x1d8] sm:$0xff]
  %v89 = vld [vmem:[%s0 + $0x1e0] sm:$0xff]
  %v90 = vld [vmem:[%s0 + $0x1e8] sm:$0xff]
  %v91 = vld [vmem:[%s0 + $0x1f0] sm:$0xff]
  %v92 = vld [vmem:[%s0 + $0x1f8] sm:$0xff]
  %v93 = vld [vmem:[%s1] sm:$0xff]
  %v94 = vld [vmem:[%s1 + $0x8] sm:$0xff]
  %v95 = vld [vmem:[%s1 + $0x10] sm:$0xff]
  %v96 = vld [vmem:[%s1 + $0x18] sm:$0xff]
  %v97 = vld [vmem:[%s1 + $0x20] sm:$0xff]
  %v98 = vld [vmem:[%s1 + $0x28] sm:$0xff]
  %v99 = vld [vmem:[%s1 + $0x30] sm:$0xff]
  %v100 = vld [vmem:[%s1 + $0x38] sm:$0xff]
  %v101 = vld [vmem:[%s1 + $0x40] sm:$0xff]
  %v102 = vld [vmem:[%s1 + $0x48] sm:$0xff]
  %v103 = vld [vmem:[%s1 + $0x50] sm:$0xff]
  %v104 = vld [vmem:[%s1 + $0x58] sm:$0xff]
  %v105 = vld [vmem:[%s1 + $0x60] sm:$0xff]
  %v106 = vld [vmem:[%s1 + $0x68] sm:$0xff]
  %v107 = vld [vmem:[%s1 + $0x70] sm:$0xff]
  %v108 = vld [vmem:[%s1 + $0x78] sm:$0xff]
  %v109 = vld [vmem:[%s1 + $0x80] sm:$0xff]
  %v110 = vld [vmem:[%s1 + $0x88] sm:$0xff]
  %v111 = vld [vmem:[%s1 + $0x90] sm:$0xff]
  %v112 = vld [vmem:[%s1 + $0x98] sm:$0xff]
  %v113 = vld [vmem:[%s1 + $0xa0] sm:$0xff]
  %v114 = vld [vmem:[%s1 + $0xa8] sm:$0xff]
  %v115 = vld [vmem:[%s1 + $0xb0] sm:$0xff]
  %v116 = vld [vmem:[%s1 + $0xb8] sm:$0xff]
  %v117 = vld [vmem:[%s1 + $0xc0] sm:$0xff]
  %v118 = vld [vmem:[%s1 + $0xc8] sm:$0xff]
  %v119 = vld [vmem:[%s1 + $0xd0] sm:$0xff]
  %v120 = vld [vmem:[%s1 + $0xd8] sm:$0xff]
  %v121 = vld [vmem:[%s1 + $0xe0] sm:$0xff]
  %v122 = vld [vmem:[%s1 + $0xe8] sm:$0xff]
  %v123 = vld [vmem:[%s1 + $0xf0] sm:$0xff]
  %v124 = vld [vmem:[%s1 + $0xf8] sm:$0xff]
  %v125 = vld [vmem:[%s2] sm:$0xff]
  %v126 = vld [vmem:[%s2 + $0x8] sm:$0xff]
  %v127 = vld [vmem:[%s2 + $0x10] sm:$0xff]
  %v128 = vld [vmem:[%s2 + $0x18] sm:$0xff]
  %v129 = vld [vmem:[%s2 + $0x20] sm:$0xff]
  %v130 = vld [vmem:[%s2 + $0x28] sm:$0xff]
  %v131 = vld [vmem:[%s2 + $0x30] sm:$0xff]
  %v132 = vld [vmem:[%s2 + $0x38] sm:$0xff]
  %v133 = vld [vmem:[%s2 + $0x40] sm:$0xff]
  %v134 = vld [vmem:[%s2 + $0x48] sm:$0xff]
  %v135 = vld [vmem:[%s2 + $0x50] sm:$0xff]
  %v136 = vld [vmem:[%s2 + $0x58] sm:$0xff]
  %v137 = vld [vmem:[%s2 + $0x60] sm:$0xff]
  %v138 = vld [vmem:[%s2 + $0x68] sm:$0xff]
  %v139 = vld [vmem:[%s2 + $0x70] sm:$0xff]
  %v140 = vld [vmem:[%s2 + $0x78] sm:$0xff]
  %v141 = vld [vmem:[%s3] sm:$0x1]
  %142 = vmatpush.msra.mxu0 %v140
  %143 = vmatpush.msra.mxu0 %v139
  %144 = vmatpush.msra.mxu0 %v138
  %145 = vmatpush.msra.mxu0 %v137
  %146 = vmatpush.msra.mxu0 %v136
  %147 = vmatpush.msra.mxu0 %v135
  %148 = vmatpush.msra.mxu0 %v134
  %149 = vmatpush.msra.mxu0 %v133
  %150 = vmatpush.msra.mxu0 %v132
  %151 = vmatpush.msra.mxu0 %v131
  %152 = vmatpush.msra.mxu0 %v130
  %153 = vmatpush.msra.mxu0 %v129
  %154 = vmatpush.msra.mxu0 %v128
  %155 = vmatpush.msra.mxu0 %v127
  %156 = vmatpush.msra.mxu0 %v126
  %157 = vmatpush.msra.mxu0 %v125
  %158 = vmatmul.f32.gmra.mxu0 %v93
  %v159 = vpop.f32.mrf.mxu0
  %v160 = vadd.f32 0.0, %v159
  %161 = vmatmul.f32.gmra.mxu0 %v94
  %v162 = vpop.f32.mrf.mxu0
  %v163 = vadd.f32 0.0, %v162
  %164 = vmatmul.f32.gmra.mxu0 %v95
  %v165 = vpop.f32.mrf.mxu0
  %v166 = vadd.f32 0.0, %v165
  %167 = vmatmul.f32.gmra.mxu0 %v96
  %v168 = vpop.f32.mrf.mxu0
  %v169 = vadd.f32 0.0, %v168
  %170 = vmatmul.f32.gmra.mxu0 %v97
  %v171 = vpop.f32.mrf.mxu0
  %v172 = vadd.f32 0.0, %v171
  %173 = vmatmul.f32.gmra.mxu0 %v98
  %v174 = vpop.f32.mrf.mxu0
  %v175 = vadd.f32 0.0, %v174
  %176 = vmatmul.f32.gmra.mxu0 %v99
  %v177 = vpop.f32.mrf.mxu0
  %v178 = vadd.f32 0.0, %v177
  %179 = vmatmul.f32.gmra.mxu0 %v100
  %v180 = vpop.f32.mrf.mxu0
  %v181 = vadd.f32 0.0, %v180
  %182 = vmatmul.f32.gmra.mxu0 %v101
  %v183 = vpop.f32.mrf.mxu0
  %v184 = vadd.f32 0.0, %v183
  %185 = vmatmul.f32.gmra.mxu0 %v102
  %v186 = vpop.f32.mrf.mxu0
  %v187 = vadd.f32 0.0, %v186
  %188 = vmatmul.f32.gmra.mxu0 %v103
  %v189 = vpop.f32.mrf.mxu0
  %v190 = vadd.f32 0.0, %v189
  %191 = vmatmul.f32.gmra.mxu0 %v104
  %v192 = vpop.f32.mrf.mxu0
  %v193 = vadd.f32 0.0, %v192
  %194 = vmatmul.f32.gmra.mxu0 %v105
  %v195 = vpop.f32.mrf.mxu0
  %v196 = vadd.f32 0.0, %v195
  %197 = vmatmul.f32.gmra.mxu0 %v106
  %v198 = vpop.f32.mrf.mxu0
  %v199 = vadd.f32 0.0, %v198
  %200 = vmatmul.f32.gmra.mxu0 %v107
  %v201 = vpop.f32.mrf.mxu0
  %v202 = vadd.f32 0.0, %v201
  %203 = vmatmul.f32.gmra.mxu0 %v108
  %v204 = vpop.f32.mrf.mxu0
  %v205 = vadd.f32 0.0, %v204
  %206 = vmatmul.f32.gmra.mxu0 %v109
  %v207 = vpop.f32.mrf.mxu0
  %v208 = vadd.f32 0.0, %v207
  %209 = vmatmul.f32.gmra.mxu0 %v110
  %v210 = vpop.f32.mrf.mxu0
  %v211 = vadd.f32 0.0, %v210
  %212 = vmatmul.f32.gmra.mxu0 %v111
  %v213 = vpop.f32.mrf.mxu0
  %v214 = vadd.f32 0.0, %v213
  %215 = vmatmul.f32.gmra.mxu0 %v112
  %v216 = vpop.f32.mrf.mxu0
  %v217 = vadd.f32 0.0, %v216
  %218 = vmatmul.f32.gmra.mxu0 %v113
  %v219 = vpop.f32.mrf.mxu0
  %v220 = vadd.f32 0.0, %v219
  %221 = vmatmul.f32.gmra.mxu0 %v114
  %v222 = vpop.f32.mrf.mxu0
  %v223 = vadd.f32 0.0, %v222
  %224 = vmatmul.f32.gmra.mxu0 %v115
  %v225 = vpop.f32.mrf.mxu0
  %v226 = vadd.f32 0.0, %v225
  %227 = vmatmul.f32.gmra.mxu0 %v116
  %v228 = vpop.f32.mrf.mxu0
  %v229 = vadd.f32 0.0, %v228
  %230 = vmatmul.f32.gmra.mxu0 %v117
  %v231 = vpop.f32.mrf.mxu0
  %v232 = vadd.f32 0.0, %v231
  %233 = vmatmul.f32.gmra.mxu0 %v118
  %v234 = vpop.f32.mrf.mxu0
  %v235 = vadd.f32 0.0, %v234
  %236 = vmatmul.f32.gmra.mxu0 %v119
  %v237 = vpop.f32.mrf.mxu0
  %v238 = vadd.f32 0.0, %v237
  %239 = vmatmul.f32.gmra.mxu0 %v120
  %v240 = vpop.f32.mrf.mxu0
  %v241 = vadd.f32 0.0, %v240
  %242 = vmatmul.f32.gmra.mxu0 %v121
  %v243 = vpop.f32.mrf.mxu0
  %v244 = vadd.f32 0.0, %v243
  %245 = vmatmul.f32.gmra.mxu0 %v122
  %v246 = vpop.f32.mrf.mxu0
  %v247 = vadd.f32 0.0, %v246
  %248 = vmatmul.f32.gmra.mxu0 %v123
  %v249 = vpop.f32.mrf.mxu0
  %v250 = vadd.f32 0.0, %v249
  %251 = vmatmul.f32.gmra.mxu0 %v124
  %v252 = vpop.f32.mrf.mxu0
  %v253 = vadd.f32 0.0, %v252
  %254 = vdwg.mxu0
  %v256 = vperm.slane %v141, 0
  %258 = vmatpush.msra.mxu0 %v205
  %259 = vmatpush.msra.mxu0 %v202
  %260 = vmatpush.msra.mxu0 %v199
  %261 = vmatpush.msra.mxu0 %v196
  %262 = vmatpush.msra.mxu0 %v193
  %263 = vmatpush.msra.mxu0 %v190
  %264 = vmatpush.msra.mxu0 %v187
  %265 = vmatpush.msra.mxu0 %v184
  %266 = vmatpush.msra.mxu0 %v181
  %267 = vmatpush.msra.mxu0 %v178
  %268 = vmatpush.msra.mxu0 %v175
  %269 = vmatpush.msra.mxu0 %v172
  %270 = vmatpush.msra.mxu0 %v169
  %271 = vmatpush.msra.mxu0 %v166
  %272 = vmatpush.msra.mxu0 %v163
  %273 = vmatpush.msra.mxu0 %v160
  %274 = vmatmul.f32.gmra.mxu0 %v29
  %v275 = vpop.f32.mrf.mxu0
  %v276 = vadd.f32 %v256, %v275
  %277 = vmatmul.f32.gmra.mxu0 %v31
  %v278 = vpop.f32.mrf.mxu0
  %v279 = vadd.f32 %v256, %v278
  %280 = vmatmul.f32.gmra.mxu0 %v33
  %v281 = vpop.f32.mrf.mxu0
  %v282 = vadd.f32 %v256, %v281
  %283 = vmatmul.f32.gmra.mxu0 %v35
  %v284 = vpop.f32.mrf.mxu0
  %v285 = vadd.f32 %v256, %v284
  %286 = vmatmul.f32.gmra.mxu0 %v37
  %v287 = vpop.f32.mrf.mxu0
  %v288 = vadd.f32 %v256, %v287
  %289 = vmatmul.f32.gmra.mxu0 %v39
  %v290 = vpop.f32.mrf.mxu0
  %v291 = vadd.f32 %v256, %v290
  %292 = vmatmul.f32.gmra.mxu0 %v41
  %v293 = vpop.f32.mrf.mxu0
  %v294 = vadd.f32 %v256, %v293
  %295 = vmatmul.f32.gmra.mxu0 %v43
  %v296 = vpop.f32.mrf.mxu0
  %v297 = vadd.f32 %v256, %v296
  %298 = vmatmul.f32.gmra.mxu0 %v45
  %v299 = vpop.f32.mrf.mxu0
  %v300 = vadd.f32 %v256, %v299
  %301 = vmatmul.f32.gmra.mxu0 %v47
  %v302 = vpop.f32.mrf.mxu0
  %v303 = vadd.f32 %v256, %v302
  %304 = vmatmul.f32.gmra.mxu0 %v49
  %v305 = vpop.f32.mrf.mxu0
  %v306 = vadd.f32 %v256, %v305
  %307 = vmatmul.f32.gmra.mxu0 %v51
  %v308 = vpop.f32.mrf.mxu0
  %v309 = vadd.f32 %v256, %v308
  %310 = vmatmul.f32.gmra.mxu0 %v53
  %v311 = vpop.f32.mrf.mxu0
  %v312 = vadd.f32 %v256, %v311
  %313 = vmatmul.f32.gmra.mxu0 %v55
  %v314 = vpop.f32.mrf.mxu0
  %v315 = vadd.f32 %v256, %v314
  %316 = vmatmul.f32.gmra.mxu0 %v57
  %v317 = vpop.f32.mrf.mxu0
  %v318 = vadd.f32 %v256, %v317
  %319 = vmatmul.f32.gmra.mxu0 %v59
  %v320 = vpop.f32.mrf.mxu0
  %v321 = vadd.f32 %v256, %v320
  %322 = vmatmul.f32.gmra.mxu0 %v61
  %v323 = vpop.f32.mrf.mxu0
  %v324 = vadd.f32 %v256, %v323
  %325 = vmatmul.f32.gmra.mxu0 %v63
  %v326 = vpop.f32.mrf.mxu0
  %v327 = vadd.f32 %v256, %v326
  %328 = vmatmul.f32.gmra.mxu0 %v65
  %v329 = vpop.f32.mrf.mxu0
  %v330 = vadd.f32 %v256, %v329
  %331 = vmatmul.f32.gmra.mxu0 %v67
  %v332 = vpop.f32.mrf.mxu0
  %v333 = vadd.f32 %v256, %v332
  %334 = vmatmul.f32.gmra.mxu0 %v69
  %v335 = vpop.f32.mrf.mxu0
  %v336 = vadd.f32 %v256, %v335
  %337 = vmatmul.f32.gmra.mxu0 %v71
  %v338 = vpop.f32.mrf.mxu0
  %v339 = vadd.f32 %v256, %v338
  %340 = vmatmul.f32.gmra.mxu0 %v73
  %v341 = vpop.f32.mrf.mxu0
  %v342 = vadd.f32 %v256, %v341
  %343 = vmatmul.f32.gmra.mxu0 %v75
  %v344 = vpop.f32.mrf.mxu0
  %v345 = vadd.f32 %v256, %v344
  %346 = vmatmul.f32.gmra.mxu0 %v77
  %v347 = vpop.f32.mrf.mxu0
  %v348 = vadd.f32 %v256, %v347
  %349 = vmatmul.f32.gmra.mxu0 %v79
  %v350 = vpop.f32.mrf.mxu0
  %v351 = vadd.f32 %v256, %v350
  %352 = vmatmul.f32.gmra.mxu0 %v81
  %v353 = vpop.f32.mrf.mxu0
  %v354 = vadd.f32 %v256, %v353
  %355 = vmatmul.f32.gmra.mxu0 %v83
  %v356 = vpop.f32.mrf.mxu0
  %v357 = vadd.f32 %v256, %v356
  %358 = vmatmul.f32.gmra.mxu0 %v85
  %v359 = vpop.f32.mrf.mxu0
  %v360 = vadd.f32 %v256, %v359
  %361 = vmatmul.f32.gmra.mxu0 %v87
  %v362 = vpop.f32.mrf.mxu0
  %v363 = vadd.f32 %v256, %v362
  %364 = vmatmul.f32.gmra.mxu0 %v89
  %v365 = vpop.f32.mrf.mxu0
  %v366 = vadd.f32 %v256, %v365
  %367 = vmatmul.f32.gmra.mxu0 %v91
  %v368 = vpop.f32.mrf.mxu0
  %v369 = vadd.f32 %v256, %v368
  %370 = vdwg.mxu0
  %371 = vmatpush.msra.mxu0 %v253
  %372 = vmatpush.msra.mxu0 %v250
  %373 = vmatpush.msra.mxu0 %v247
  %374 = vmatpush.msra.mxu0 %v244
  %375 = vmatpush.msra.mxu0 %v241
  %376 = vmatpush.msra.mxu0 %v238
  %377 = vmatpush.msra.mxu0 %v235
  %378 = vmatpush.msra.mxu0 %v232
  %379 = vmatpush.msra.mxu0 %v229
  %380 = vmatpush.msra.mxu0 %v226
  %381 = vmatpush.msra.mxu0 %v223
  %382 = vmatpush.msra.mxu0 %v220
  %383 = vmatpush.msra.mxu0 %v217
  %384 = vmatpush.msra.mxu0 %v214
  %385 = vmatpush.msra.mxu0 %v211
  %386 = vmatpush.msra.mxu0 %v208
  %387 = vmatmul.f32.gmra.mxu0 %v30
  %v388 = vpop.f32.mrf.mxu0
  %v389 = vadd.f32 %v276, %v388
  %390 = vmatmul.f32.gmra.mxu0 %v32
  %v391 = vpop.f32.mrf.mxu0
  %v392 = vadd.f32 %v279, %v391
  %393 = vmatmul.f32.gmra.mxu0 %v34
  %v394 = vpop.f32.mrf.mxu0
  %v395 = vadd.f32 %v282, %v394
  %396 = vmatmul.f32.gmra.mxu0 %v36
  %v397 = vpop.f32.mrf.mxu0
  %v398 = vadd.f32 %v285, %v397
  %399 = vmatmul.f32.gmra.mxu0 %v38
  %v400 = vpop.f32.mrf.mxu0
  %v401 = vadd.f32 %v288, %v400
  %402 = vmatmul.f32.gmra.mxu0 %v40
  %v403 = vpop.f32.mrf.mxu0
  %v404 = vadd.f32 %v291, %v403
  %405 = vmatmul.f32.gmra.mxu0 %v42
  %v406 = vpop.f32.mrf.mxu0
  %v407 = vadd.f32 %v294, %v406
  %408 = vmatmul.f32.gmra.mxu0 %v44
  %v409 = vpop.f32.mrf.mxu0
  %v410 = vadd.f32 %v297, %v409
  %411 = vmatmul.f32.gmra.mxu0 %v46
  %v412 = vpop.f32.mrf.mxu0
  %v413 = vadd.f32 %v300, %v412
  %414 = vmatmul.f32.gmra.mxu0 %v48
  %v415 = vpop.f32.mrf.mxu0
  %v416 = vadd.f32 %v303, %v415
  %417 = vmatmul.f32.gmra.mxu0 %v50
  %v418 = vpop.f32.mrf.mxu0
  %v419 = vadd.f32 %v306, %v418
  %420 = vmatmul.f32.gmra.mxu0 %v52
  %v421 = vpop.f32.mrf.mxu0
  %v422 = vadd.f32 %v309, %v421
  %423 = vmatmul.f32.gmra.mxu0 %v54
  %v424 = vpop.f32.mrf.mxu0
  %v425 = vadd.f32 %v312, %v424
  %426 = vmatmul.f32.gmra.mxu0 %v56
  %v427 = vpop.f32.mrf.mxu0
  %v428 = vadd.f32 %v315, %v427
  %429 = vmatmul.f32.gmra.mxu0 %v58
  %v430 = vpop.f32.mrf.mxu0
  %v431 = vadd.f32 %v318, %v430
  %432 = vmatmul.f32.gmra.mxu0 %v60
  %v433 = vpop.f32.mrf.mxu0
  %v434 = vadd.f32 %v321, %v433
  %435 = vmatmul.f32.gmra.mxu0 %v62
  %v436 = vpop.f32.mrf.mxu0
  %v437 = vadd.f32 %v324, %v436
  %438 = vmatmul.f32.gmra.mxu0 %v64
  %v439 = vpop.f32.mrf.mxu0
  %v440 = vadd.f32 %v327, %v439
  %441 = vmatmul.f32.gmra.mxu0 %v66
  %v442 = vpop.f32.mrf.mxu0
  %v443 = vadd.f32 %v330, %v442
  %444 = vmatmul.f32.gmra.mxu0 %v68
  %v445 = vpop.f32.mrf.mxu0
  %v446 = vadd.f32 %v333, %v445
  %447 = vmatmul.f32.gmra.mxu0 %v70
  %v448 = vpop.f32.mrf.mxu0
  %v449 = vadd.f32 %v336, %v448
  %450 = vmatmul.f32.gmra.mxu0 %v72
  %v451 = vpop.f32.mrf.mxu0
  %v452 = vadd.f32 %v339, %v451
  %453 = vmatmul.f32.gmra.mxu0 %v74
  %v454 = vpop.f32.mrf.mxu0
  %v455 = vadd.f32 %v342, %v454
  %456 = vmatmul.f32.gmra.mxu0 %v76
  %v457 = vpop.f32.mrf.mxu0
  %v458 = vadd.f32 %v345, %v457
  %459 = vmatmul.f32.gmra.mxu0 %v78
  %v460 = vpop.f32.mrf.mxu0
  %v461 = vadd.f32 %v348, %v460
  %462 = vmatmul.f32.gmra.mxu0 %v80
  %v463 = vpop.f32.mrf.mxu0
  %v464 = vadd.f32 %v351, %v463
  %465 = vmatmul.f32.gmra.mxu0 %v82
  %v466 = vpop.f32.mrf.mxu0
  %v467 = vadd.f32 %v354, %v466
  %468 = vmatmul.f32.gmra.mxu0 %v84
  %v469 = vpop.f32.mrf.mxu0
  %v470 = vadd.f32 %v357, %v469
  %471 = vmatmul.f32.gmra.mxu0 %v86
  %v472 = vpop.f32.mrf.mxu0
  %v473 = vadd.f32 %v360, %v472
  %474 = vmatmul.f32.gmra.mxu0 %v88
  %v475 = vpop.f32.mrf.mxu0
  %v476 = vadd.f32 %v363, %v475
  %477 = vmatmul.f32.gmra.mxu0 %v90
  %v478 = vpop.f32.mrf.mxu0
  %v479 = vadd.f32 %v366, %v478
  %480 = vmatmul.f32.gmra.mxu0 %v92
  %v481 = vpop.f32.mrf.mxu0
  %v482 = vadd.f32 %v369, %v481
  %483 = vdwg.mxu0
  %v484 = vmax.f32 %v389, 0.0
  %v485 = vmax.f32 %v392, 0.0
  %v486 = vmax.f32 %v395, 0.0
  %v487 = vmax.f32 %v398, 0.0
  %v488 = vmax.f32 %v401, 0.0
  %v489 = vmax.f32 %v404, 0.0
  %v490 = vmax.f32 %v407, 0.0
  %v491 = vmax.f32 %v410, 0.0
  %v492 = vmax.f32 %v413, 0.0
  %v493 = vmax.f32 %v416, 0.0
  %v494 = vmax.f32 %v419, 0.0
  %v495 = vmax.f32 %v422, 0.0
  %v496 = vmax.f32 %v425, 0.0
  %v497 = vmax.f32 %v428, 0.0
  %v498 = vmax.f32 %v431, 0.0
  %v499 = vmax.f32 %v434, 0.0
  %v500 = vmax.f32 %v437, 0.0
  %v501 = vmax.f32 %v440, 0.0
  %v502 = vmax.f32 %v443, 0.0
  %v503 = vmax.f32 %v446, 0.0
  %v504 = vmax.f32 %v449, 0.0
  %v505 = vmax.f32 %v452, 0.0
  %v506 = vmax.f32 %v455, 0.0
  %v507 = vmax.f32 %v458, 0.0
  %v508 = vmax.f32 %v461, 0.0
  %v509 = vmax.f32 %v464, 0.0
  %v510 = vmax.f32 %v467, 0.0
  %v511 = vmax.f32 %v470, 0.0
  %v512 = vmax.f32 %v473, 0.0
  %v513 = vmax.f32 %v476, 0.0
  %v514 = vmax.f32 %v479, 0.0
  %v515 = vmax.f32 %v482, 0.0
  %v516 = vld [vmem:[%s4] sm:$0xff]
  %v517 = vld [vmem:[%s4 + $0x8] sm:$0xff]
  %v518 = vld [vmem:[%s4 + $0x10] sm:$0xff]
  %v519 = vld [vmem:[%s4 + $0x18] sm:$0xff]
  %v520 = vld [vmem:[%s4 + $0x20] sm:$0xff]
  %v521 = vld [vmem:[%s4 + $0x28] sm:$0xff]
  %v522 = vld [vmem:[%s4 + $0x30] sm:$0xff]
  %v523 = vld [vmem:[%s4 + $0x38] sm:$0xff]
  %v524 = vld [vmem:[%s4 + $0x40] sm:$0xff]
  %v525 = vld [vmem:[%s4 + $0x48] sm:$0xff]
  %v526 = vld [vmem:[%s4 + $0x50] sm:$0xff]
  %v527 = vld [vmem:[%s4 + $0x58] sm:$0xff]
  %v528 = vld [vmem:[%s4 + $0x60] sm:$0xff]
  %v529 = vld [vmem:[%s4 + $0x68] sm:$0xff]
  %v530 = vld [vmem:[%s4 + $0x70] sm:$0xff]
  %v531 = vld [vmem:[%s4 + $0x78] sm:$0xff]
  %v532 = vld [vmem:[%s5] sm:$0x1]
  %533 = vmatpush.msra.mxu0 %v531
  %534 = vmatpush.msra.mxu0 %v530
  %535 = vmatpush.msra.mxu0 %v529
  %536 = vmatpush.msra.mxu0 %v528
  %537 = vmatpush.msra.mxu0 %v527
  %538 = vmatpush.msra.mxu0 %v526
  %539 = vmatpush.msra.mxu0 %v525
  %540 = vmatpush.msra.mxu0 %v524
  %541 = vmatpush.msra.mxu0 %v523
  %542 = vmatpush.msra.mxu0 %v522
  %543 = vmatpush.msra.mxu0 %v521
  %544 = vmatpush.msra.mxu0 %v520
  %545 = vmatpush.msra.mxu0 %v519
  %546 = vmatpush.msra.mxu0 %v518
  %547 = vmatpush.msra.mxu0 %v517
  %548 = vmatpush.msra.mxu0 %v516
  %549 = vmatmul.f32.gmra.mxu0 %v484
  %v550 = vpop.f32.mrf.mxu0
  %v551 = vadd.f32 0.0, %v550
  %552 = vmatmul.f32.gmra.mxu0 %v485
  %v553 = vpop.f32.mrf.mxu0
  %v554 = vadd.f32 0.0, %v553
  %555 = vmatmul.f32.gmra.mxu0 %v486
  %v556 = vpop.f32.mrf.mxu0
  %v557 = vadd.f32 0.0, %v556
  %558 = vmatmul.f32.gmra.mxu0 %v487
  %v559 = vpop.f32.mrf.mxu0
  %v560 = vadd.f32 0.0, %v559
  %561 = vmatmul.f32.gmra.mxu0 %v488
  %v562 = vpop.f32.mrf.mxu0
  %v563 = vadd.f32 0.0, %v562
  %564 = vmatmul.f32.gmra.mxu0 %v489
  %v565 = vpop.f32.mrf.mxu0
  %v566 = vadd.f32 0.0, %v565
  %567 = vmatmul.f32.gmra.mxu0 %v490
  %v568 = vpop.f32.mrf.mxu0
  %v569 = vadd.f32 0.0, %v568
  %570 = vmatmul.f32.gmra.mxu0 %v491
  %v571 = vpop.f32.mrf.mxu0
  %v572 = vadd.f32 0.0, %v571
  %573 = vmatmul.f32.gmra.mxu0 %v492
  %v574 = vpop.f32.mrf.mxu0
  %v575 = vadd.f32 0.0, %v574
  %576 = vmatmul.f32.gmra.mxu0 %v493
  %v577 = vpop.f32.mrf.mxu0
  %v578 = vadd.f32 0.0, %v577
  %579 = vmatmul.f32.gmra.mxu0 %v494
  %v580 = vpop.f32.mrf.mxu0
  %v581 = vadd.f32 0.0, %v580
  %582 = vmatmul.f32.gmra.mxu0 %v495
  %v583 = vpop.f32.mrf.mxu0
  %v584 = vadd.f32 0.0, %v583
  %585 = vmatmul.f32.gmra.mxu0 %v496
  %v586 = vpop.f32.mrf.mxu0
  %v587 = vadd.f32 0.0, %v586
  %588 = vmatmul.f32.gmra.mxu0 %v497
  %v589 = vpop.f32.mrf.mxu0
  %v590 = vadd.f32 0.0, %v589
  %591 = vmatmul.f32.gmra.mxu0 %v498
  %v592 = vpop.f32.mrf.mxu0
  %v593 = vadd.f32 0.0, %v592
  %594 = vmatmul.f32.gmra.mxu0 %v499
  %v595 = vpop.f32.mrf.mxu0
  %v596 = vadd.f32 0.0, %v595
  %597 = vmatmul.f32.gmra.mxu0 %v500
  %v598 = vpop.f32.mrf.mxu0
  %v599 = vadd.f32 0.0, %v598
  %600 = vmatmul.f32.gmra.mxu0 %v501
  %v601 = vpop.f32.mrf.mxu0
  %v602 = vadd.f32 0.0, %v601
  %603 = vmatmul.f32.gmra.mxu0 %v502
  %v604 = vpop.f32.mrf.mxu0
  %v605 = vadd.f32 0.0, %v604
  %606 = vmatmul.f32.gmra.mxu0 %v503
  %v607 = vpop.f32.mrf.mxu0
  %v608 = vadd.f32 0.0, %v607
  %609 = vmatmul.f32.gmra.mxu0 %v504
  %v610 = vpop.f32.mrf.mxu0
  %v611 = vadd.f32 0.0, %v610
  %612 = vmatmul.f32.gmra.mxu0 %v505
  %v613 = vpop.f32.mrf.mxu0
  %v614 = vadd.f32 0.0, %v613
  %615 = vmatmul.f32.gmra.mxu0 %v506
  %v616 = vpop.f32.mrf.mxu0
  %v617 = vadd.f32 0.0, %v616
  %618 = vmatmul.f32.gmra.mxu0 %v507
  %v619 = vpop.f32.mrf.mxu0
  %v620 = vadd.f32 0.0, %v619
  %621 = vmatmul.f32.gmra.mxu0 %v508
  %v622 = vpop.f32.mrf.mxu0
  %v623 = vadd.f32 0.0, %v622
  %624 = vmatmul.f32.gmra.mxu0 %v509
  %v625 = vpop.f32.mrf.mxu0
  %v626 = vadd.f32 0.0, %v625
  %627 = vmatmul.f32.gmra.mxu0 %v510
  %v628 = vpop.f32.mrf.mxu0
  %v629 = vadd.f32 0.0, %v628
  %630 = vmatmul.f32.gmra.mxu0 %v511
  %v631 = vpop.f32.mrf.mxu0
  %v632 = vadd.f32 0.0, %v631
  %633 = vmatmul.f32.gmra.mxu0 %v512
  %v634 = vpop.f32.mrf.mxu0
  %v635 = vadd.f32 0.0, %v634
  %636 = vmatmul.f32.gmra.mxu0 %v513
  %v637 = vpop.f32.mrf.mxu0
  %v638 = vadd.f32 0.0, %v637
  %639 = vmatmul.f32.gmra.mxu0 %v514
  %v640 = vpop.f32.mrf.mxu0
  %v641 = vadd.f32 0.0, %v640
  %642 = vmatmul.f32.gmra.mxu0 %v515
  %v643 = vpop.f32.mrf.mxu0
  %v644 = vadd.f32 0.0, %v643
  %645 = vdwg.mxu0
  %v647 = vperm.slane %v532, 0
  %649 = vmatpush.msra.mxu0 %v596
  %650 = vmatpush.msra.mxu0 %v593
  %651 = vmatpush.msra.mxu0 %v590
  %652 = vmatpush.msra.mxu0 %v587
  %653 = vmatpush.msra.mxu0 %v584
  %654 = vmatpush.msra.mxu0 %v581
  %655 = vmatpush.msra.mxu0 %v578
  %656 = vmatpush.msra.mxu0 %v575
  %657 = vmatpush.msra.mxu0 %v572
  %658 = vmatpush.msra.mxu0 %v569
  %659 = vmatpush.msra.mxu0 %v566
  %660 = vmatpush.msra.mxu0 %v563
  %661 = vmatpush.msra.mxu0 %v560
  %662 = vmatpush.msra.mxu0 %v557
  %663 = vmatpush.msra.mxu0 %v554
  %664 = vmatpush.msra.mxu0 %v551
  %665 = vmatmul.f32.gmra.mxu0 %v29
  %v666 = vpop.f32.mrf.mxu0
  %v667 = vadd.f32 %v647, %v666
  %668 = vmatmul.f32.gmra.mxu0 %v31
  %v669 = vpop.f32.mrf.mxu0
  %v670 = vadd.f32 %v647, %v669
  %671 = vmatmul.f32.gmra.mxu0 %v33
  %v672 = vpop.f32.mrf.mxu0
  %v673 = vadd.f32 %v647, %v672
  %674 = vmatmul.f32.gmra.mxu0 %v35
  %v675 = vpop.f32.mrf.mxu0
  %v676 = vadd.f32 %v647, %v675
  %677 = vmatmul.f32.gmra.mxu0 %v37
  %v678 = vpop.f32.mrf.mxu0
  %v679 = vadd.f32 %v647, %v678
  %680 = vmatmul.f32.gmra.mxu0 %v39
  %v681 = vpop.f32.mrf.mxu0
  %v682 = vadd.f32 %v647, %v681
  %683 = vmatmul.f32.gmra.mxu0 %v41
  %v684 = vpop.f32.mrf.mxu0
  %v685 = vadd.f32 %v647, %v684
  %686 = vmatmul.f32.gmra.mxu0 %v43
  %v687 = vpop.f32.mrf.mxu0
  %v688 = vadd.f32 %v647, %v687
  %689 = vmatmul.f32.gmra.mxu0 %v45
  %v690 = vpop.f32.mrf.mxu0
  %v691 = vadd.f32 %v647, %v690
  %692 = vmatmul.f32.gmra.mxu0 %v47
  %v693 = vpop.f32.mrf.mxu0
  %v694 = vadd.f32 %v647, %v693
  %695 = vmatmul.f32.gmra.mxu0 %v49
  %v696 = vpop.f32.mrf.mxu0
  %v697 = vadd.f32 %v647, %v696
  %698 = vmatmul.f32.gmra.mxu0 %v51
  %v699 = vpop.f32.mrf.mxu0
  %v700 = vadd.f32 %v647, %v699
  %701 = vmatmul.f32.gmra.mxu0 %v53
  %v702 = vpop.f32.mrf.mxu0
  %v703 = vadd.f32 %v647, %v702
  %704 = vmatmul.f32.gmra.mxu0 %v55
  %v705 = vpop.f32.mrf.mxu0
  %v706 = vadd.f32 %v647, %v705
  %707 = vmatmul.f32.gmra.mxu0 %v57
  %v708 = vpop.f32.mrf.mxu0
  %v709 = vadd.f32 %v647, %v708
  %710 = vmatmul.f32.gmra.mxu0 %v59
  %v711 = vpop.f32.mrf.mxu0
  %v712 = vadd.f32 %v647, %v711
  %713 = vmatmul.f32.gmra.mxu0 %v61
  %v714 = vpop.f32.mrf.mxu0
  %v715 = vadd.f32 %v647, %v714
  %716 = vmatmul.f32.gmra.mxu0 %v63
  %v717 = vpop.f32.mrf.mxu0
  %v718 = vadd.f32 %v647, %v717
  %719 = vmatmul.f32.gmra.mxu0 %v65
  %v720 = vpop.f32.mrf.mxu0
  %v721 = vadd.f32 %v647, %v720
  %722 = vmatmul.f32.gmra.mxu0 %v67
  %v723 = vpop.f32.mrf.mxu0
  %v724 = vadd.f32 %v647, %v723
  %725 = vmatmul.f32.gmra.mxu0 %v69
  %v726 = vpop.f32.mrf.mxu0
  %v727 = vadd.f32 %v647, %v726
  %728 = vmatmul.f32.gmra.mxu0 %v71
  %v729 = vpop.f32.mrf.mxu0
  %v730 = vadd.f32 %v647, %v729
  %731 = vmatmul.f32.gmra.mxu0 %v73
  %v732 = vpop.f32.mrf.mxu0
  %v733 = vadd.f32 %v647, %v732
  %734 = vmatmul.f32.gmra.mxu0 %v75
  %v735 = vpop.f32.mrf.mxu0
  %v736 = vadd.f32 %v647, %v735
  %737 = vmatmul.f32.gmra.mxu0 %v77
  %v738 = vpop.f32.mrf.mxu0
  %v739 = vadd.f32 %v647, %v738
  %740 = vmatmul.f32.gmra.mxu0 %v79
  %v741 = vpop.f32.mrf.mxu0
  %v742 = vadd.f32 %v647, %v741
  %743 = vmatmul.f32.gmra.mxu0 %v81
  %v744 = vpop.f32.mrf.mxu0
  %v745 = vadd.f32 %v647, %v744
  %746 = vmatmul.f32.gmra.mxu0 %v83
  %v747 = vpop.f32.mrf.mxu0
  %v748 = vadd.f32 %v647, %v747
  %749 = vmatmul.f32.gmra.mxu0 %v85
  %v750 = vpop.f32.mrf.mxu0
  %v751 = vadd.f32 %v647, %v750
  %752 = vmatmul.f32.gmra.mxu0 %v87
  %v753 = vpop.f32.mrf.mxu0
  %v754 = vadd.f32 %v647, %v753
  %755 = vmatmul.f32.gmra.mxu0 %v89
  %v756 = vpop.f32.mrf.mxu0
  %v757 = vadd.f32 %v647, %v756
  %758 = vmatmul.f32.gmra.mxu0 %v91
  %v759 = vpop.f32.mrf.mxu0
  %v760 = vadd.f32 %v647, %v759
  %761 = vdwg.mxu0
  %762 = vmatpush.msra.mxu0 %v644
  %763 = vmatpush.msra.mxu0 %v641
  %764 = vmatpush.msra.mxu0 %v638
  %765 = vmatpush.msra.mxu0 %v635
  %766 = vmatpush.msra.mxu0 %v632
  %767 = vmatpush.msra.mxu0 %v629
  %768 = vmatpush.msra.mxu0 %v626
  %769 = vmatpush.msra.mxu0 %v623
  %770 = vmatpush.msra.mxu0 %v620
  %771 = vmatpush.msra.mxu0 %v617
  %772 = vmatpush.msra.mxu0 %v614
  %773 = vmatpush.msra.mxu0 %v611
  %774 = vmatpush.msra.mxu0 %v608
  %775 = vmatpush.msra.mxu0 %v605
  %776 = vmatpush.msra.mxu0 %v602
  %777 = vmatpush.msra.mxu0 %v599
  %778 = vmatmul.f32.gmra.mxu0 %v30
  %v779 = vpop.f32.mrf.mxu0
  %v780 = vadd.f32 %v667, %v779
  %781 = vmatmul.f32.gmra.mxu0 %v32
  %v782 = vpop.f32.mrf.mxu0
  %v783 = vadd.f32 %v670, %v782
  %784 = vmatmul.f32.gmra.mxu0 %v34
  %v785 = vpop.f32.mrf.mxu0
  %v786 = vadd.f32 %v673, %v785
  %787 = vmatmul.f32.gmra.mxu0 %v36
  %v788 = vpop.f32.mrf.mxu0
  %v789 = vadd.f32 %v676, %v788
  %790 = vmatmul.f32.gmra.mxu0 %v38
  %v791 = vpop.f32.mrf.mxu0
  %v792 = vadd.f32 %v679, %v791
  %793 = vmatmul.f32.gmra.mxu0 %v40
  %v794 = vpop.f32.mrf.mxu0
  %v795 = vadd.f32 %v682, %v794
  %796 = vmatmul.f32.gmra.mxu0 %v42
  %v797 = vpop.f32.mrf.mxu0
  %v798 = vadd.f32 %v685, %v797
  %799 = vmatmul.f32.gmra.mxu0 %v44
  %v800 = vpop.f32.mrf.mxu0
  %v801 = vadd.f32 %v688, %v800
  %802 = vmatmul.f32.gmra.mxu0 %v46
  %v803 = vpop.f32.mrf.mxu0
  %v804 = vadd.f32 %v691, %v803
  %805 = vmatmul.f32.gmra.mxu0 %v48
  %v806 = vpop.f32.mrf.mxu0
  %v807 = vadd.f32 %v694, %v806
  %808 = vmatmul.f32.gmra.mxu0 %v50
  %v809 = vpop.f32.mrf.mxu0
  %v810 = vadd.f32 %v697, %v809
  %811 = vmatmul.f32.gmra.mxu0 %v52
  %v812 = vpop.f32.mrf.mxu0
  %v813 = vadd.f32 %v700, %v812
  %814 = vmatmul.f32.gmra.mxu0 %v54
  %v815 = vpop.f32.mrf.mxu0
  %v816 = vadd.f32 %v703, %v815
  %817 = vmatmul.f32.gmra.mxu0 %v56
  %v818 = vpop.f32.mrf.mxu0
  %v819 = vadd.f32 %v706, %v818
  %820 = vmatmul.f32.gmra.mxu0 %v58
  %v821 = vpop.f32.mrf.mxu0
  %v822 = vadd.f32 %v709, %v821
  %823 = vmatmul.f32.gmra.mxu0 %v60
  %v824 = vpop.f32.mrf.mxu0
  %v825 = vadd.f32 %v712, %v824
  %826 = vmatmul.f32.gmra.mxu0 %v62
  %v827 = vpop.f32.mrf.mxu0
  %v828 = vadd.f32 %v715, %v827
  %829 = vmatmul.f32.gmra.mxu0 %v64
  %v830 = vpop.f32.mrf.mxu0
  %v831 = vadd.f32 %v718, %v830
  %832 = vmatmul.f32.gmra.mxu0 %v66
  %v833 = vpop.f32.mrf.mxu0
  %v834 = vadd.f32 %v721, %v833
  %835 = vmatmul.f32.gmra.mxu0 %v68
  %v836 = vpop.f32.mrf.mxu0
  %v837 = vadd.f32 %v724, %v836
  %838 = vmatmul.f32.gmra.mxu0 %v70
  %v839 = vpop.f32.mrf.mxu0
  %v840 = vadd.f32 %v727, %v839
  %841 = vmatmul.f32.gmra.mxu0 %v72
  %v842 = vpop.f32.mrf.mxu0
  %v843 = vadd.f32 %v730, %v842
  %844 = vmatmul.f32.gmra.mxu0 %v74
  %v845 = vpop.f32.mrf.mxu0
  %v846 = vadd.f32 %v733, %v845
  %847 = vmatmul.f32.gmra.mxu0 %v76
  %v848 = vpop.f32.mrf.mxu0
  %v849 = vadd.f32 %v736, %v848
  %850 = vmatmul.f32.gmra.mxu0 %v78
  %v851 = vpop.f32.mrf.mxu0
  %v852 = vadd.f32 %v739, %v851
  %853 = vmatmul.f32.gmra.mxu0 %v80
  %v854 = vpop.f32.mrf.mxu0
  %v855 = vadd.f32 %v742, %v854
  %856 = vmatmul.f32.gmra.mxu0 %v82
  %v857 = vpop.f32.mrf.mxu0
  %v858 = vadd.f32 %v745, %v857
  %859 = vmatmul.f32.gmra.mxu0 %v84
  %v860 = vpop.f32.mrf.mxu0
  %v861 = vadd.f32 %v748, %v860
  %862 = vmatmul.f32.gmra.mxu0 %v86
  %v863 = vpop.f32.mrf.mxu0
  %v864 = vadd.f32 %v751, %v863
  %865 = vmatmul.f32.gmra.mxu0 %v88
  %v866 = vpop.f32.mrf.mxu0
  %v867 = vadd.f32 %v754, %v866
  %868 = vmatmul.f32.gmra.mxu0 %v90
  %v869 = vpop.f32.mrf.mxu0
  %v870 = vadd.f32 %v757, %v869
  %871 = vmatmul.f32.gmra.mxu0 %v92
  %v872 = vpop.f32.mrf.mxu0
  %v873 = vadd.f32 %v760, %v872
  %874 = vdwg.mxu0
  %v875 = vmax.f32 %v780, 0.0
  %v876 = vmax.f32 %v783, 0.0
  %v877 = vmax.f32 %v786, 0.0
  %v878 = vmax.f32 %v789, 0.0
  %v879 = vmax.f32 %v792, 0.0
  %v880 = vmax.f32 %v795, 0.0
  %v881 = vmax.f32 %v798, 0.0
  %v882 = vmax.f32 %v801, 0.0
  %v883 = vmax.f32 %v804, 0.0
  %v884 = vmax.f32 %v807, 0.0
  %v885 = vmax.f32 %v810, 0.0
  %v886 = vmax.f32 %v813, 0.0
  %v887 = vmax.f32 %v816, 0.0
  %v888 = vmax.f32 %v819, 0.0
  %v889 = vmax.f32 %v822, 0.0
  %v890 = vmax.f32 %v825, 0.0
  %v891 = vmax.f32 %v828, 0.0
  %v892 = vmax.f32 %v831, 0.0
  %v893 = vmax.f32 %v834, 0.0
  %v894 = vmax.f32 %v837, 0.0
  %v895 = vmax.f32 %v840, 0.0
  %v896 = vmax.f32 %v843, 0.0
  %v897 = vmax.f32 %v846, 0.0
  %v898 = vmax.f32 %v849, 0.0
  %v899 = vmax.f32 %v852, 0.0
  %v900 = vmax.f32 %v855, 0.0
  %v901 = vmax.f32 %v858, 0.0
  %v902 = vmax.f32 %v861, 0.0
  %v903 = vmax.f32 %v864, 0.0
  %v904 = vmax.f32 %v867, 0.0
  %v905 = vmax.f32 %v870, 0.0
  %v906 = vmax.f32 %v873, 0.0
  %v907 = vld [vmem:[%s6] sm:$0xff]
  %v908 = vld [vmem:[%s6 + $0x8] sm:$0xff]
  %v909 = vld [vmem:[%s6 + $0x10] sm:$0xff]
  %v910 = vld [vmem:[%s6 + $0x18] sm:$0xff]
  %v911 = vld [vmem:[%s6 + $0x20] sm:$0xff]
  %v912 = vld [vmem:[%s6 + $0x28] sm:$0xff]
  %v913 = vld [vmem:[%s6 + $0x30] sm:$0xff]
  %v914 = vld [vmem:[%s6 + $0x38] sm:$0xff]
  %v915 = vld [vmem:[%s6 + $0x40] sm:$0xff]
  %v916 = vld [vmem:[%s6 + $0x48] sm:$0xff]
  %v917 = vld [vmem:[%s6 + $0x50] sm:$0xff]
  %v918 = vld [vmem:[%s6 + $0x58] sm:$0xff]
  %v919 = vld [vmem:[%s6 + $0x60] sm:$0xff]
  %v920 = vld [vmem:[%s6 + $0x68] sm:$0xff]
  %v921 = vld [vmem:[%s6 + $0x70] sm:$0xff]
  %v922 = vld [vmem:[%s6 + $0x78] sm:$0xff]
  %v923 = vld [vmem:[%s7] sm:$0x1]
  %924 = vmatpush.msra.mxu0 %v922
  %925 = vmatpush.msra.mxu0 %v921
  %926 = vmatpush.msra.mxu0 %v920
  %927 = vmatpush.msra.mxu0 %v919
  %928 = vmatpush.msra.mxu0 %v918
  %929 = vmatpush.msra.mxu0 %v917
  %930 = vmatpush.msra.mxu0 %v916
  %931 = vmatpush.msra.mxu0 %v915
  %932 = vmatpush.msra.mxu0 %v914
  %933 = vmatpush.msra.mxu0 %v913
  %934 = vmatpush.msra.mxu0 %v912
  %935 = vmatpush.msra.mxu0 %v911
  %936 = vmatpush.msra.mxu0 %v910
  %937 = vmatpush.msra.mxu0 %v909
  %938 = vmatpush.msra.mxu0 %v908
  %939 = vmatpush.msra.mxu0 %v907
  %940 = vmatmul.f32.gmra.mxu0 %v875
  %v941 = vpop.f32.mrf.mxu0
  %v942 = vadd.f32 0.0, %v941
  %943 = vmatmul.f32.gmra.mxu0 %v876
  %v944 = vpop.f32.mrf.mxu0
  %v945 = vadd.f32 0.0, %v944
  %946 = vmatmul.f32.gmra.mxu0 %v877
  %v947 = vpop.f32.mrf.mxu0
  %v948 = vadd.f32 0.0, %v947
  %949 = vmatmul.f32.gmra.mxu0 %v878
  %v950 = vpop.f32.mrf.mxu0
  %v951 = vadd.f32 0.0, %v950
  %952 = vmatmul.f32.gmra.mxu0 %v879
  %v953 = vpop.f32.mrf.mxu0
  %v954 = vadd.f32 0.0, %v953
  %955 = vmatmul.f32.gmra.mxu0 %v880
  %v956 = vpop.f32.mrf.mxu0
  %v957 = vadd.f32 0.0, %v956
  %958 = vmatmul.f32.gmra.mxu0 %v881
  %v959 = vpop.f32.mrf.mxu0
  %v960 = vadd.f32 0.0, %v959
  %961 = vmatmul.f32.gmra.mxu0 %v882
  %v962 = vpop.f32.mrf.mxu0
  %v963 = vadd.f32 0.0, %v962
  %964 = vmatmul.f32.gmra.mxu0 %v883
  %v965 = vpop.f32.mrf.mxu0
  %v966 = vadd.f32 0.0, %v965
  %967 = vmatmul.f32.gmra.mxu0 %v884
  %v968 = vpop.f32.mrf.mxu0
  %v969 = vadd.f32 0.0, %v968
  %970 = vmatmul.f32.gmra.mxu0 %v885
  %v971 = vpop.f32.mrf.mxu0
  %v972 = vadd.f32 0.0, %v971
  %973 = vmatmul.f32.gmra.mxu0 %v886
  %v974 = vpop.f32.mrf.mxu0
  %v975 = vadd.f32 0.0, %v974
  %976 = vmatmul.f32.gmra.mxu0 %v887
  %v977 = vpop.f32.mrf.mxu0
  %v978 = vadd.f32 0.0, %v977
  %979 = vmatmul.f32.gmra.mxu0 %v888
  %v980 = vpop.f32.mrf.mxu0
  %v981 = vadd.f32 0.0, %v980
  %982 = vmatmul.f32.gmra.mxu0 %v889
  %v983 = vpop.f32.mrf.mxu0
  %v984 = vadd.f32 0.0, %v983
  %985 = vmatmul.f32.gmra.mxu0 %v890
  %v986 = vpop.f32.mrf.mxu0
  %v987 = vadd.f32 0.0, %v986
  %988 = vmatmul.f32.gmra.mxu0 %v891
  %v989 = vpop.f32.mrf.mxu0
  %v990 = vadd.f32 0.0, %v989
  %991 = vmatmul.f32.gmra.mxu0 %v892
  %v992 = vpop.f32.mrf.mxu0
  %v993 = vadd.f32 0.0, %v992
  %994 = vmatmul.f32.gmra.mxu0 %v893
  %v995 = vpop.f32.mrf.mxu0
  %v996 = vadd.f32 0.0, %v995
  %997 = vmatmul.f32.gmra.mxu0 %v894
  %v998 = vpop.f32.mrf.mxu0
  %v999 = vadd.f32 0.0, %v998
  %1000 = vmatmul.f32.gmra.mxu0 %v895
  %v1001 = vpop.f32.mrf.mxu0
  %v1002 = vadd.f32 0.0, %v1001
  %1003 = vmatmul.f32.gmra.mxu0 %v896
  %v1004 = vpop.f32.mrf.mxu0
  %v1005 = vadd.f32 0.0, %v1004
  %1006 = vmatmul.f32.gmra.mxu0 %v897
  %v1007 = vpop.f32.mrf.mxu0
  %v1008 = vadd.f32 0.0, %v1007
  %1009 = vmatmul.f32.gmra.mxu0 %v898
  %v1010 = vpop.f32.mrf.mxu0
  %v1011 = vadd.f32 0.0, %v1010
  %1012 = vmatmul.f32.gmra.mxu0 %v899
  %v1013 = vpop.f32.mrf.mxu0
  %v1014 = vadd.f32 0.0, %v1013
  %1015 = vmatmul.f32.gmra.mxu0 %v900
  %v1016 = vpop.f32.mrf.mxu0
  %v1017 = vadd.f32 0.0, %v1016
  %1018 = vmatmul.f32.gmra.mxu0 %v901
  %v1019 = vpop.f32.mrf.mxu0
  %v1020 = vadd.f32 0.0, %v1019
  %1021 = vmatmul.f32.gmra.mxu0 %v902
  %v1022 = vpop.f32.mrf.mxu0
  %v1023 = vadd.f32 0.0, %v1022
  %1024 = vmatmul.f32.gmra.mxu0 %v903
  %v1025 = vpop.f32.mrf.mxu0
  %v1026 = vadd.f32 0.0, %v1025
  %1027 = vmatmul.f32.gmra.mxu0 %v904
  %v1028 = vpop.f32.mrf.mxu0
  %v1029 = vadd.f32 0.0, %v1028
  %1030 = vmatmul.f32.gmra.mxu0 %v905
  %v1031 = vpop.f32.mrf.mxu0
  %v1032 = vadd.f32 0.0, %v1031
  %1033 = vmatmul.f32.gmra.mxu0 %v906
  %v1034 = vpop.f32.mrf.mxu0
  %v1035 = vadd.f32 0.0, %v1034
  %1036 = vdwg.mxu0
  %v1038 = vperm.slane %v923, 0
  %1040 = vmatpush.msra.mxu0 %v987
  %1041 = vmatpush.msra.mxu0 %v984
  %1042 = vmatpush.msra.mxu0 %v981
  %1043 = vmatpush.msra.mxu0 %v978
  %1044 = vmatpush.msra.mxu0 %v975
  %1045 = vmatpush.msra.mxu0 %v972
  %1046 = vmatpush.msra.mxu0 %v969
  %1047 = vmatpush.msra.mxu0 %v966
  %1048 = vmatpush.msra.mxu0 %v963
  %1049 = vmatpush.msra.mxu0 %v960
  %1050 = vmatpush.msra.mxu0 %v957
  %1051 = vmatpush.msra.mxu0 %v954
  %1052 = vmatpush.msra.mxu0 %v951
  %1053 = vmatpush.msra.mxu0 %v948
  %1054 = vmatpush.msra.mxu0 %v945
  %1055 = vmatpush.msra.mxu0 %v942
  %1056 = vmatmul.f32.gmra.mxu0 %v29
  %v1057 = vpop.f32.mrf.mxu0
  %v1058 = vadd.f32 %v1038, %v1057
  %1059 = vmatmul.f32.gmra.mxu0 %v31
  %v1060 = vpop.f32.mrf.mxu0
  %v1061 = vadd.f32 %v1038, %v1060
  %1062 = vmatmul.f32.gmra.mxu0 %v33
  %v1063 = vpop.f32.mrf.mxu0
  %v1064 = vadd.f32 %v1038, %v1063
  %1065 = vmatmul.f32.gmra.mxu0 %v35
  %v1066 = vpop.f32.mrf.mxu0
  %v1067 = vadd.f32 %v1038, %v1066
  %1068 = vmatmul.f32.gmra.mxu0 %v37
  %v1069 = vpop.f32.mrf.mxu0
  %v1070 = vadd.f32 %v1038, %v1069
  %1071 = vmatmul.f32.gmra.mxu0 %v39
  %v1072 = vpop.f32.mrf.mxu0
  %v1073 = vadd.f32 %v1038, %v1072
  %1074 = vmatmul.f32.gmra.mxu0 %v41
  %v1075 = vpop.f32.mrf.mxu0
  %v1076 = vadd.f32 %v1038, %v1075
  %1077 = vmatmul.f32.gmra.mxu0 %v43
  %v1078 = vpop.f32.mrf.mxu0
  %v1079 = vadd.f32 %v1038, %v1078
  %1080 = vmatmul.f32.gmra.mxu0 %v45
  %v1081 = vpop.f32.mrf.mxu0
  %v1082 = vadd.f32 %v1038, %v1081
  %1083 = vmatmul.f32.gmra.mxu0 %v47
  %v1084 = vpop.f32.mrf.mxu0
  %v1085 = vadd.f32 %v1038, %v1084
  %1086 = vmatmul.f32.gmra.mxu0 %v49
  %v1087 = vpop.f32.mrf.mxu0
  %v1088 = vadd.f32 %v1038, %v1087
  %1089 = vmatmul.f32.gmra.mxu0 %v51
  %v1090 = vpop.f32.mrf.mxu0
  %v1091 = vadd.f32 %v1038, %v1090
  %1092 = vmatmul.f32.gmra.mxu0 %v53
  %v1093 = vpop.f32.mrf.mxu0
  %v1094 = vadd.f32 %v1038, %v1093
  %1095 = vmatmul.f32.gmra.mxu0 %v55
  %v1096 = vpop.f32.mrf.mxu0
  %v1097 = vadd.f32 %v1038, %v1096
  %1098 = vmatmul.f32.gmra.mxu0 %v57
  %v1099 = vpop.f32.mrf.mxu0
  %v1100 = vadd.f32 %v1038, %v1099
  %1101 = vmatmul.f32.gmra.mxu0 %v59
  %v1102 = vpop.f32.mrf.mxu0
  %v1103 = vadd.f32 %v1038, %v1102
  %1104 = vmatmul.f32.gmra.mxu0 %v61
  %v1105 = vpop.f32.mrf.mxu0
  %v1106 = vadd.f32 %v1038, %v1105
  %1107 = vmatmul.f32.gmra.mxu0 %v63
  %v1108 = vpop.f32.mrf.mxu0
  %v1109 = vadd.f32 %v1038, %v1108
  %1110 = vmatmul.f32.gmra.mxu0 %v65
  %v1111 = vpop.f32.mrf.mxu0
  %v1112 = vadd.f32 %v1038, %v1111
  %1113 = vmatmul.f32.gmra.mxu0 %v67
  %v1114 = vpop.f32.mrf.mxu0
  %v1115 = vadd.f32 %v1038, %v1114
  %1116 = vmatmul.f32.gmra.mxu0 %v69
  %v1117 = vpop.f32.mrf.mxu0
  %v1118 = vadd.f32 %v1038, %v1117
  %1119 = vmatmul.f32.gmra.mxu0 %v71
  %v1120 = vpop.f32.mrf.mxu0
  %v1121 = vadd.f32 %v1038, %v1120
  %1122 = vmatmul.f32.gmra.mxu0 %v73
  %v1123 = vpop.f32.mrf.mxu0
  %v1124 = vadd.f32 %v1038, %v1123
  %1125 = vmatmul.f32.gmra.mxu0 %v75
  %v1126 = vpop.f32.mrf.mxu0
  %v1127 = vadd.f32 %v1038, %v1126
  %1128 = vmatmul.f32.gmra.mxu0 %v77
  %v1129 = vpop.f32.mrf.mxu0
  %v1130 = vadd.f32 %v1038, %v1129
  %1131 = vmatmul.f32.gmra.mxu0 %v79
  %v1132 = vpop.f32.mrf.mxu0
  %v1133 = vadd.f32 %v1038, %v1132
  %1134 = vmatmul.f32.gmra.mxu0 %v81
  %v1135 = vpop.f32.mrf.mxu0
  %v1136 = vadd.f32 %v1038, %v1135
  %1137 = vmatmul.f32.gmra.mxu0 %v83
  %v1138 = vpop.f32.mrf.mxu0
  %v1139 = vadd.f32 %v1038, %v1138
  %1140 = vmatmul.f32.gmra.mxu0 %v85
  %v1141 = vpop.f32.mrf.mxu0
  %v1142 = vadd.f32 %v1038, %v1141
  %1143 = vmatmul.f32.gmra.mxu0 %v87
  %v1144 = vpop.f32.mrf.mxu0
  %v1145 = vadd.f32 %v1038, %v1144
  %1146 = vmatmul.f32.gmra.mxu0 %v89
  %v1147 = vpop.f32.mrf.mxu0
  %v1148 = vadd.f32 %v1038, %v1147
  %1149 = vmatmul.f32.gmra.mxu0 %v91
  %v1150 = vpop.f32.mrf.mxu0
  %v1151 = vadd.f32 %v1038, %v1150
  %1152 = vdwg.mxu0
  %1153 = vmatpush.msra.mxu0 %v1035
  %1154 = vmatpush.msra.mxu0 %v1032
  %1155 = vmatpush.msra.mxu0 %v1029
  %1156 = vmatpush.msra.mxu0 %v1026
  %1157 = vmatpush.msra.mxu0 %v1023
  %1158 = vmatpush.msra.mxu0 %v1020
  %1159 = vmatpush.msra.mxu0 %v1017
  %1160 = vmatpush.msra.mxu0 %v1014
  %1161 = vmatpush.msra.mxu0 %v1011
  %1162 = vmatpush.msra.mxu0 %v1008
  %1163 = vmatpush.msra.mxu0 %v1005
  %1164 = vmatpush.msra.mxu0 %v1002
  %1165 = vmatpush.msra.mxu0 %v999
  %1166 = vmatpush.msra.mxu0 %v996
  %1167 = vmatpush.msra.mxu0 %v993
  %1168 = vmatpush.msra.mxu0 %v990
  %1169 = vmatmul.f32.gmra.mxu0 %v30
  %v1170 = vpop.f32.mrf.mxu0
  %v1171 = vadd.f32 %v1058, %v1170
  %1172 = vmatmul.f32.gmra.mxu0 %v32
  %v1173 = vpop.f32.mrf.mxu0
  %v1174 = vadd.f32 %v1061, %v1173
  %1175 = vmatmul.f32.gmra.mxu0 %v34
  %v1176 = vpop.f32.mrf.mxu0
  %v1177 = vadd.f32 %v1064, %v1176
  %1178 = vmatmul.f32.gmra.mxu0 %v36
  %v1179 = vpop.f32.mrf.mxu0
  %v1180 = vadd.f32 %v1067, %v1179
  %1181 = vmatmul.f32.gmra.mxu0 %v38
  %v1182 = vpop.f32.mrf.mxu0
  %v1183 = vadd.f32 %v1070, %v1182
  %1184 = vmatmul.f32.gmra.mxu0 %v40
  %v1185 = vpop.f32.mrf.mxu0
  %v1186 = vadd.f32 %v1073, %v1185
  %1187 = vmatmul.f32.gmra.mxu0 %v42
  %v1188 = vpop.f32.mrf.mxu0
  %v1189 = vadd.f32 %v1076, %v1188
  %1190 = vmatmul.f32.gmra.mxu0 %v44
  %v1191 = vpop.f32.mrf.mxu0
  %v1192 = vadd.f32 %v1079, %v1191
  %1193 = vmatmul.f32.gmra.mxu0 %v46
  %v1194 = vpop.f32.mrf.mxu0
  %v1195 = vadd.f32 %v1082, %v1194
  %1196 = vmatmul.f32.gmra.mxu0 %v48
  %v1197 = vpop.f32.mrf.mxu0
  %v1198 = vadd.f32 %v1085, %v1197
  %1199 = vmatmul.f32.gmra.mxu0 %v50
  %v1200 = vpop.f32.mrf.mxu0
  %v1201 = vadd.f32 %v1088, %v1200
  %1202 = vmatmul.f32.gmra.mxu0 %v52
  %v1203 = vpop.f32.mrf.mxu0
  %v1204 = vadd.f32 %v1091, %v1203
  %1205 = vmatmul.f32.gmra.mxu0 %v54
  %v1206 = vpop.f32.mrf.mxu0
  %v1207 = vadd.f32 %v1094, %v1206
  %1208 = vmatmul.f32.gmra.mxu0 %v56
  %v1209 = vpop.f32.mrf.mxu0
  %v1210 = vadd.f32 %v1097, %v1209
  %1211 = vmatmul.f32.gmra.mxu0 %v58
  %v1212 = vpop.f32.mrf.mxu0
  %v1213 = vadd.f32 %v1100, %v1212
  %1214 = vmatmul.f32.gmra.mxu0 %v60
  %v1215 = vpop.f32.mrf.mxu0
  %v1216 = vadd.f32 %v1103, %v1215
  %1217 = vmatmul.f32.gmra.mxu0 %v62
  %v1218 = vpop.f32.mrf.mxu0
  %v1219 = vadd.f32 %v1106, %v1218
  %1220 = vmatmul.f32.gmra.mxu0 %v64
  %v1221 = vpop.f32.mrf.mxu0
  %v1222 = vadd.f32 %v1109, %v1221
  %1223 = vmatmul.f32.gmra.mxu0 %v66
  %v1224 = vpop.f32.mrf.mxu0
  %v1225 = vadd.f32 %v1112, %v1224
  %1226 = vmatmul.f32.gmra.mxu0 %v68
  %v1227 = vpop.f32.mrf.mxu0
  %v1228 = vadd.f32 %v1115, %v1227
  %1229 = vmatmul.f32.gmra.mxu0 %v70
  %v1230 = vpop.f32.mrf.mxu0
  %v1231 = vadd.f32 %v1118, %v1230
  %1232 = vmatmul.f32.gmra.mxu0 %v72
  %v1233 = vpop.f32.mrf.mxu0
  %v1234 = vadd.f32 %v1121, %v1233
  %1235 = vmatmul.f32.gmra.mxu0 %v74
  %v1236 = vpop.f32.mrf.mxu0
  %v1237 = vadd.f32 %v1124, %v1236
  %1238 = vmatmul.f32.gmra.mxu0 %v76
  %v1239 = vpop.f32.mrf.mxu0
  %v1240 = vadd.f32 %v1127, %v1239
  %1241 = vmatmul.f32.gmra.mxu0 %v78
  %v1242 = vpop.f32.mrf.mxu0
  %v1243 = vadd.f32 %v1130, %v1242
  %1244 = vmatmul.f32.gmra.mxu0 %v80
  %v1245 = vpop.f32.mrf.mxu0
  %v1246 = vadd.f32 %v1133, %v1245
  %1247 = vmatmul.f32.gmra.mxu0 %v82
  %v1248 = vpop.f32.mrf.mxu0
  %v1249 = vadd.f32 %v1136, %v1248
  %1250 = vmatmul.f32.gmra.mxu0 %v84
  %v1251 = vpop.f32.mrf.mxu0
  %v1252 = vadd.f32 %v1139, %v1251
  %1253 = vmatmul.f32.gmra.mxu0 %v86
  %v1254 = vpop.f32.mrf.mxu0
  %v1255 = vadd.f32 %v1142, %v1254
  %1256 = vmatmul.f32.gmra.mxu0 %v88
  %v1257 = vpop.f32.mrf.mxu0
  %v1258 = vadd.f32 %v1145, %v1257
  %1259 = vmatmul.f32.gmra.mxu0 %v90
  %v1260 = vpop.f32.mrf.mxu0
  %v1261 = vadd.f32 %v1148, %v1260
  %1262 = vmatmul.f32.gmra.mxu0 %v92
  %v1263 = vpop.f32.mrf.mxu0
  %v1264 = vadd.f32 %v1151, %v1263
  %1265 = vdwg.mxu0
  %v1266 = vmax.f32 %v1171, 0.0
  %v1267 = vmax.f32 %v1174, 0.0
  %v1268 = vmax.f32 %v1177, 0.0
  %v1269 = vmax.f32 %v1180, 0.0
  %v1270 = vmax.f32 %v1183, 0.0
  %v1271 = vmax.f32 %v1186, 0.0
  %v1272 = vmax.f32 %v1189, 0.0
  %v1273 = vmax.f32 %v1192, 0.0
  %v1274 = vmax.f32 %v1195, 0.0
  %v1275 = vmax.f32 %v1198, 0.0
  %v1276 = vmax.f32 %v1201, 0.0
  %v1277 = vmax.f32 %v1204, 0.0
  %v1278 = vmax.f32 %v1207, 0.0
  %v1279 = vmax.f32 %v1210, 0.0
  %v1280 = vmax.f32 %v1213, 0.0
  %v1281 = vmax.f32 %v1216, 0.0
  %v1282 = vmax.f32 %v1219, 0.0
  %v1283 = vmax.f32 %v1222, 0.0
  %v1284 = vmax.f32 %v1225, 0.0
  %v1285 = vmax.f32 %v1228, 0.0
  %v1286 = vmax.f32 %v1231, 0.0
  %v1287 = vmax.f32 %v1234, 0.0
  %v1288 = vmax.f32 %v1237, 0.0
  %v1289 = vmax.f32 %v1240, 0.0
  %v1290 = vmax.f32 %v1243, 0.0
  %v1291 = vmax.f32 %v1246, 0.0
  %v1292 = vmax.f32 %v1249, 0.0
  %v1293 = vmax.f32 %v1252, 0.0
  %v1294 = vmax.f32 %v1255, 0.0
  %v1295 = vmax.f32 %v1258, 0.0
  %v1296 = vmax.f32 %v1261, 0.0
  %v1297 = vmax.f32 %v1264, 0.0
  %1298 = vst [vmem:[%s8] sm:$0xff] %v1266
  %1299 = vst [vmem:[%s8 + $0x8] sm:$0xff] %v1267
  %1300 = vst [vmem:[%s8 + $0x10] sm:$0xff] %v1268
  %1301 = vst [vmem:[%s8 + $0x18] sm:$0xff] %v1269
  %1302 = vst [vmem:[%s8 + $0x20] sm:$0xff] %v1270
  %1303 = vst [vmem:[%s8 + $0x28] sm:$0xff] %v1271
  %1304 = vst [vmem:[%s8 + $0x30] sm:$0xff] %v1272
  %1305 = vst [vmem:[%s8 + $0x38] sm:$0xff] %v1273
  %1306 = vst [vmem:[%s8 + $0x40] sm:$0xff] %v1274
  %1307 = vst [vmem:[%s8 + $0x48] sm:$0xff] %v1275
  %1308 = vst [vmem:[%s8 + $0x50] sm:$0xff] %v1276
  %1309 = vst [vmem:[%s8 + $0x58] sm:$0xff] %v1277
  %1310 = vst [vmem:[%s8 + $0x60] sm:$0xff] %v1278
  %1311 = vst [vmem:[%s8 + $0x68] sm:$0xff] %v1279
  %1312 = vst [vmem:[%s8 + $0x70] sm:$0xff] %v1280
  %1313 = vst [vmem:[%s8 + $0x78] sm:$0xff] %v1281
  %1314 = vst [vmem:[%s8 + $0x80] sm:$0xff] %v1282
  %1315 = vst [vmem:[%s8 + $0x88] sm:$0xff] %v1283
  %1316 = vst [vmem:[%s8 + $0x90] sm:$0xff] %v1284
  %1317 = vst [vmem:[%s8 + $0x98] sm:$0xff] %v1285
  %1318 = vst [vmem:[%s8 + $0xa0] sm:$0xff] %v1286
  %1319 = vst [vmem:[%s8 + $0xa8] sm:$0xff] %v1287
  %1320 = vst [vmem:[%s8 + $0xb0] sm:$0xff] %v1288
  %1321 = vst [vmem:[%s8 + $0xb8] sm:$0xff] %v1289
  %1322 = vst [vmem:[%s8 + $0xc0] sm:$0xff] %v1290
  %1323 = vst [vmem:[%s8 + $0xc8] sm:$0xff] %v1291
  %1324 = vst [vmem:[%s8 + $0xd0] sm:$0xff] %v1292
  %1325 = vst [vmem:[%s8 + $0xd8] sm:$0xff] %v1293
  %1326 = vst [vmem:[%s8 + $0xe0] sm:$0xff] %v1294
  %1327 = vst [vmem:[%s8 + $0xe8] sm:$0xff] %v1295
  %1328 = vst [vmem:[%s8 + $0xf0] sm:$0xff] %v1296
  %1329 = vst [vmem:[%s8 + $0xf8] sm:$0xff] %v1297
  // Predicated region
  $region34: #{fwd.1} parent=0 // pred_check
    _
  $region35: #{fwd.1} parent=0 // pred_check_branch
    %1331 = sbr.rel (0) target = $region37
  $region36: #{fwd.1} parent=0 // pred_region
    _
  $region37: #{fwd.1} parent=0 // pred_fallthru
    _
  // Predicated region
  $region38: #{fwd.1} parent=0 // pred_check
    _
  $region39: #{fwd.1} parent=0 // pred_check_branch
    %1333 = sbr.rel (0) target = $region41
  $region40: #{fwd.1} parent=0 // pred_region
    _
  $region41: #{fwd.1} parent=0 // pred_fallthru
    _

</llo_original>
